<compile_context>
chip_gen: v6e
topology: v6e:2x2x1
jax: 0.10.0
libtpu: 0.0.40
codegen_flags: <defaults>
</compile_context>

<pallas_src>
import math

import jax
import jax.numpy as jnp
from jax.experimental import pallas as pl
from jax.experimental.pallas import tpu as pltpu

# Problem sizes (small, consistent with the module's defaults scaled down)
S = 8          # sequence_length
B = 2          # batch_size
H = 32         # hidden_dim
NH = 4         # n_head
DK = H // NH   # d_k
FF = 64        # feed_forward_dim
EPS = 1e-5     # nn.LayerNorm default eps
BS = B * S     # flattened row count


# ----------------------------- in-kernel helpers -----------------------------

def _erf(x):
    # Abramowitz & Stegun 7.1.26 (|err| < 1.5e-7). Kept (instead of tanh-GELU
    # or lax.erf) so the GELU matches nn.GELU's exact-erf semantics and the
    # Mosaic lowering is guaranteed; cost is a handful of VPU ops on a (16,64)
    # tile, which is negligible at this size.
    a1, a2, a3, a4, a5 = 0.254829592, -0.284496736, 1.421413741, -1.453152027, 1.061405429
    p = 0.3275911
    sgn = jnp.where(x >= 0.0, 1.0, -1.0)
    ax = jnp.abs(x)
    t = 1.0 / (1.0 + p * ax)
    poly = ((((a5 * t + a4) * t + a3) * t + a2) * t + a1) * t
    return sgn * (1.0 - poly * jnp.exp(-ax * ax))


def _gelu(x):
    return 0.5 * x * (1.0 + _erf(x * (1.0 / math.sqrt(2.0))))


def _layer_norm(h, gamma, beta):
    mu = jnp.mean(h, axis=-1, keepdims=True)
    d = h - mu
    var = jnp.mean(d * d, axis=-1, keepdims=True)
    return d * jax.lax.rsqrt(var + EPS) * gamma + beta


# --------------------------------- kernel ------------------------------------

def encoder_block_kernel(x_ref, nmask_ref, keep_ref, wqkvo_ref, w1_ref, w2_ref,
                         vec_ref, o_ref):
    x = x_ref[...]              # (BS, H)   rows ordered (batch-major, seq-minor)
    neg_mask = nmask_ref[...]   # (BS, BS)  0 or -1e30 (cross-batch / <PAD> key)
    keep = keep_ref[...]        # (BS, 1)   1.0 for real tokens, 0.0 for <PAD>
    vecs = vec_ref[...]         # (10, FF)  packed bias / LN / head-lane vectors

    b1 = vecs[0:1, :]           # (1, FF)
    b2 = vecs[1:2, :H]          # (1, H)
    g1 = vecs[2:3, :H]
    be1 = vecs[3:4, :H]
    g2 = vecs[4:5, :H]
    be2 = vecs[5:6, :H]

    # ---- fused QKV projection for both batches: one (16,32)@(32,96) matmul ----
    qkv = jnp.dot(x, wqkvo_ref[:, 0:3 * H], preferred_element_type=jnp.float32)
    q_all = qkv[:, 0:H]
    k_all = qkv[:, H:2 * H]
    v_all = qkv[:, 2 * H:3 * H]

    inv_sqrt_dk = 1.0 / math.sqrt(DK)

    # ---- per-head attention over the whole (B*S) slab ----
    # Cross-batch and <PAD>-key score entries get -1e30 so their softmax weight
    # is exactly 0.0 in f32 -> identical to per-batch attention.  Each head's
    # context is routed to its own lane range via head_lanes, so the sum over
    # heads IS the concatenated multi-head context.
    ctx = jnp.zeros((BS, H), jnp.float32)
    for n in range(NH):                      # NH = 4, unrolled
        lo, hi = n * DK, (n + 1) * DK
        q = q_all[:, lo:hi]                  # (BS, DK)
        k = k_all[:, lo:hi]                  # (BS, DK)
        s = jnp.dot(q, k.T, preferred_element_type=jnp.float32) * inv_sqrt_dk + neg_mask
        m = jnp.max(s, axis=-1, keepdims=True)
        e = jnp.exp(s - m)
        p_attn = e * pl.reciprocal(jnp.sum(e, axis=-1, keepdims=True), approx=True)
        head_lanes = vecs[6 + n:7 + n, :H]   # (1, H): 1.0 exactly on lanes [lo,hi)
        ctx = ctx + jnp.dot(p_attn, v_all * head_lanes,
                            preferred_element_type=jnp.float32)     # (BS, H)

    # ---- single O projection + query-pad masking (hoisted out of head loop) ----
    # (zeroing <PAD> rows before or after the bias-free O matmul is identical)
    att = jnp.dot(ctx, wqkvo_ref[:, 3 * H:4 * H],
                  preferred_element_type=jnp.float32) * keep

    # dropout1: identity (inference mode)
    h1 = _layer_norm(att + x, g1, be1)

    # feed-forward: Linear -> GELU -> Linear
    y = jnp.dot(h1, w1_ref[...], preferred_element_type=jnp.float32) + b1
    y = _gelu(y)
    y = jnp.dot(y, w2_ref[...], preferred_element_type=jnp.float32) + b2

    # dropout2: identity (inference mode)
    h2 = _layer_norm(y + h1, g2, be2)

    # output[padding_mask] = 0.0 ; single contiguous slab store
    o_ref[...] = h2 * keep


# --------------------------------- wrapper -----------------------------------

def transformer_encoder_block(x, padding_mask, params):
    # Flatten (S, B, H) -> (B*S, H), batch-major rows (host-side layout plumbing).
    x_flat = jnp.transpose(x, (1, 0, 2)).reshape(BS, H)

    pad_flat = padding_mask.T.reshape(BS)                       # (BS,) bool, row = b*S + s
    keep = (~pad_flat).astype(jnp.float32)[:, None]             # (BS, 1)

    # Combined additive attention mask: -1e30 for cross-batch or <PAD>-key entries.
    batch_id = jnp.arange(BS, dtype=jnp.int32) // S
    same_batch = batch_id[:, None] == batch_id[None, :]
    allowed = same_batch & (~pad_flat)[None, :]
    neg_mask = jnp.where(allowed, 0.0, -1e30).astype(jnp.float32)   # (BS, BS)

    # Pack projection weights: [wq | wk | wv | wo]  -> (H, 4H) = (32, 128)
    w_qkvo = jnp.concatenate(
        [params["wq"], params["wk"], params["wv"], params["wo"]], axis=1)

    # Pack all small vectors into one (10, FF) array:
    #   row 0: b1 (FF) | row 1: b2 | rows 2-5: g1, be1, g2, be2 | rows 6-9: head-lane masks
    head_masks = (jnp.arange(H)[None, :] // DK ==
                  jnp.arange(NH)[:, None]).astype(jnp.float32)      # (NH, H)
    vecs = jnp.zeros((6 + NH, FF), jnp.float32)
    vecs = vecs.at[0, :FF].set(params["b1"][0])
    vecs = vecs.at[1, :H].set(params["b2"][0])
    vecs = vecs.at[2, :H].set(params["g1"][0])
    vecs = vecs.at[3, :H].set(params["be1"][0])
    vecs = vecs.at[4, :H].set(params["g2"][0])
    vecs = vecs.at[5, :H].set(params["be2"][0])
    vecs = vecs.at[6:6 + NH, :H].set(head_masks)

    args = (x_flat, neg_mask, keep, w_qkvo, params["w1"], params["w2"], vecs)

    def full_spec(shape):
        nd = len(shape)
        return pl.BlockSpec(shape, lambda i, _nd=nd: (0,) * _nd)

    out_flat = pl.pallas_call(
        encoder_block_kernel,
        out_shape=jax.ShapeDtypeStruct((BS, H), jnp.float32),
        grid=(1,),
        in_specs=[full_spec(a.shape) for a in args],
        out_specs=full_spec((BS, H)),
        compiler_params=pltpu.CompilerParams(dimension_semantics=("arbitrary",)),
    )(*args)

    return jnp.transpose(out_flat.reshape(B, S, H), (1, 0, 2))     # back to (S, B, H)


# --------------------------- pure-JAX reference -------------------------------

def reference(x, padding_mask, p):
    q = (x @ p["wq"]).reshape(S, B, NH, DK)
    k = (x @ p["wk"]).reshape(S, B, NH, DK)
    v = (x @ p["wv"]).reshape(S, B, NH, DK)
    scores = jnp.einsum("sbnd,tbnd->bnst", q, k) / math.sqrt(DK)
    scores = jnp.where(padding_mask.T[:, None, None, :], -jnp.inf, scores)
    p_attn = jax.nn.softmax(scores, axis=-1)
    att = jnp.einsum("bnst,tbnd->sbnd", p_attn, v)
    att = jnp.where(padding_mask[:, :, None, None], 0.0, att)
    att = att.reshape(S, B, H) @ p["wo"]

    def ln(h, g, b):
        mu = jnp.mean(h, -1, keepdims=True)
        var = jnp.mean((h - mu) ** 2, -1, keepdims=True)
        return (h - mu) * jax.lax.rsqrt(var + EPS) * g + b

    h1 = ln(att + x, p["g1"], p["be1"])
    y = jax.nn.gelu(h1 @ p["w1"] + p["b1"], approximate=False) @ p["w2"] + p["b2"]
    h2 = ln(y + h1, p["g2"], p["be2"])
    return jnp.where(padding_mask[:, :, None], 0.0, h2)


# ----------------------------------- main -------------------------------------

if __name__ == "__main__":
    key = jax.random.PRNGKey(0)
    ks = jax.random.split(key, 12)

    scale = 0.1
    params = {
        # projection weights stored as (in_dim, out_dim) so the kernel does x @ W
        "wq": scale * jax.random.normal(ks[0], (H, H), jnp.float32),
        "wk": scale * jax.random.normal(ks[1], (H, H), jnp.float32),
        "wv": scale * jax.random.normal(ks[2], (H, H), jnp.float32),
        "wo": scale * jax.random.normal(ks[3], (H, H), jnp.float32),
        "w1": scale * jax.random.normal(ks[4], (H, FF), jnp.float32),
        "b1": scale * jax.random.normal(ks[5], (1, FF), jnp.float32),
        "w2": scale * jax.random.normal(ks[6], (FF, H), jnp.float32),
        "b2": scale * jax.random.normal(ks[7], (1, H), jnp.float32),
        "g1": 1.0 + 0.1 * jax.random.normal(ks[8], (1, H), jnp.float32),
        "be1": 0.1 * jax.random.normal(ks[9], (1, H), jnp.float32),
        "g2": 1.0 + 0.1 * jax.random.normal(ks[10], (1, H), jnp.float32),
        "be2": 0.1 * jax.random.normal(ks[11], (1, H), jnp.float32),
    }

    # Input: (S, B, H); padded positions must be exactly zero (module asserts this).
    padding_mask = jnp.zeros((S, B), dtype=jnp.bool_)
    padding_mask = padding_mask.at[6:, 0].set(True)   # last 2 tokens of batch 0 are <PAD>
    padding_mask = padding_mask.at[5:, 1].set(True)   # last 3 tokens of batch 1 are <PAD>
    x = jax.random.normal(jax.random.PRNGKey(42), (S, B, H), jnp.float32)
    x = jnp.where(padding_mask[:, :, None], 0.0, x)

    out = transformer_encoder_block(x, padding_mask, params)
    out = jax.block_until_ready(out)

    ref = reference(x, padding_mask, params)
    assert out.shape == (S, B, H)
    assert jnp.allclose(out, ref, atol=2e-3, rtol=2e-3), float(jnp.max(jnp.abs(out - ref)))

    print("KERNEL_OK")
</pallas_src>

<mosaic_0001>
module attributes {stable_mosaic.version = 11 : i64} {
  func.func @encoder_block_kernel(%arg0: i32, %arg1: memref<16x32xf32, #tpu.memory_space<vmem>>, %arg2: memref<16x16xf32, #tpu.memory_space<vmem>>, %arg3: memref<16x1xf32, #tpu.memory_space<vmem>>, %arg4: memref<32x128xf32, #tpu.memory_space<vmem>>, %arg5: memref<32x64xf32, #tpu.memory_space<vmem>>, %arg6: memref<64x32xf32, #tpu.memory_space<vmem>>, %arg7: memref<10x64xf32, #tpu.memory_space<vmem>>, %arg8: memref<16x32xf32, #tpu.memory_space<vmem>>) attributes {dimension_semantics = [#tpu.dimension_semantics<arbitrary>], iteration_bounds = array<i64: 1>, scalar_prefetch = 0 : i64, scratch_operands = 0 : i64, tpu.core_type = #tpu.core_type<tc>, window_params = [{pipeline_mode = #tpu.pipeline_mode<synchronous>, transform_indices = @transform_0, window_bounds = array<i64: 16, 32>}, {pipeline_mode = #tpu.pipeline_mode<synchronous>, transform_indices = @transform_1, window_bounds = array<i64: 16, 16>}, {pipeline_mode = #tpu.pipeline_mode<synchronous>, transform_indices = @transform_2, window_bounds = array<i64: 16, 1>}, {pipeline_mode = #tpu.pipeline_mode<synchronous>, transform_indices = @transform_3, window_bounds = array<i64: 32, 128>}, {pipeline_mode = #tpu.pipeline_mode<synchronous>, transform_indices = @transform_4, window_bounds = array<i64: 32, 64>}, {pipeline_mode = #tpu.pipeline_mode<synchronous>, transform_indices = @transform_5, window_bounds = array<i64: 64, 32>}, {pipeline_mode = #tpu.pipeline_mode<synchronous>, transform_indices = @transform_6, window_bounds = array<i64: 10, 64>}, {pipeline_mode = #tpu.pipeline_mode<synchronous>, transform_indices = @transform_7, window_bounds = array<i64: 16, 32>}]} {
    %c0 = arith.constant 0 : index
    %c0_0 = arith.constant 0 : index
    %0 = vector.load %arg1[%c0, %c0_0] : memref<16x32xf32, #tpu.memory_space<vmem>>, vector<16x32xf32>
    %c0_1 = arith.constant 0 : index
    %c0_2 = arith.constant 0 : index
    %1 = vector.load %arg2[%c0_1, %c0_2] : memref<16x16xf32, #tpu.memory_space<vmem>>, vector<16x16xf32>
    %c0_3 = arith.constant 0 : index
    %c0_4 = arith.constant 0 : index
    %2 = vector.load %arg3[%c0_3, %c0_4] : memref<16x1xf32, #tpu.memory_space<vmem>>, vector<16x1xf32>
    %c0_5 = arith.constant 0 : index
    %c0_6 = arith.constant 0 : index
    %3 = vector.load %arg7[%c0_5, %c0_6] : memref<10x64xf32, #tpu.memory_space<vmem>>, vector<10x64xf32>
    %4 = vector.extract_strided_slice %3 {offsets = [0, 0], sizes = [1, 64], strides = [1, 1]} : vector<10x64xf32> to vector<1x64xf32>
    %5 = vector.extract_strided_slice %3 {offsets = [1, 0], sizes = [1, 32], strides = [1, 1]} : vector<10x64xf32> to vector<1x32xf32>
    %6 = vector.extract_strided_slice %3 {offsets = [2, 0], sizes = [1, 32], strides = [1, 1]} : vector<10x64xf32> to vector<1x32xf32>
    %7 = vector.extract_strided_slice %3 {offsets = [3, 0], sizes = [1, 32], strides = [1, 1]} : vector<10x64xf32> to vector<1x32xf32>
    %8 = vector.extract_strided_slice %3 {offsets = [4, 0], sizes = [1, 32], strides = [1, 1]} : vector<10x64xf32> to vector<1x32xf32>
    %9 = vector.extract_strided_slice %3 {offsets = [5, 0], sizes = [1, 32], strides = [1, 1]} : vector<10x64xf32> to vector<1x32xf32>
    %c0_7 = arith.constant 0 : index
    %c0_8 = arith.constant 0 : index
    %10 = vector.load %arg4[%c0_7, %c0_8] : memref<32x128xf32, #tpu.memory_space<vmem>>, vector<32x96xf32>
    %cst = arith.constant dense<0.000000e+00> : vector<16x96xf32>
    %11 = tpu.matmul %0, %10, %cst {dimension_numbers = #tpu.dot_dimension_numbers<[1], [0], [0], [1], [0, 0, 1, 1], [], []>} : vector<16x32xf32>, vector<32x96xf32>, vector<16x96xf32> -> vector<16x96xf32>
    %12 = vector.extract_strided_slice %11 {offsets = [0, 0], sizes = [16, 32], strides = [1, 1]} : vector<16x96xf32> to vector<16x32xf32>
    %13 = vector.extract_strided_slice %11 {offsets = [0, 32], sizes = [16, 32], strides = [1, 1]} : vector<16x96xf32> to vector<16x32xf32>
    %14 = vector.extract_strided_slice %11 {offsets = [0, 64], sizes = [16, 32], strides = [1, 1]} : vector<16x96xf32> to vector<16x32xf32>
    %cst_9 = arith.constant 0.000000e+00 : f32
    %15 = vector.broadcast %cst_9 : f32 to vector<16x32xf32>
    %16 = vector.extract_strided_slice %12 {offsets = [0, 0], sizes = [16, 8], strides = [1, 1]} : vector<16x32xf32> to vector<16x8xf32>
    %17 = vector.extract_strided_slice %13 {offsets = [0, 0], sizes = [16, 8], strides = [1, 1]} : vector<16x32xf32> to vector<16x8xf32>
    %18 = tpu.transpose %17, [1, 0] : vector<16x8xf32> -> vector<8x16xf32>
    %cst_10 = arith.constant dense<0.000000e+00> : vector<16x16xf32>
    %19 = tpu.matmul %16, %18, %cst_10 {dimension_numbers = #tpu.dot_dimension_numbers<[1], [0], [0], [1], [0, 0, 1, 1], [], []>} : vector<16x8xf32>, vector<8x16xf32>, vector<16x16xf32> -> vector<16x16xf32>
    %cst_11 = arith.constant 0.353553385 : f32
    %20 = vector.broadcast %cst_11 : f32 to vector<16x16xf32>
    %21 = arith.mulf %19, %20 : vector<16x16xf32>
    %22 = arith.addf %21, %1 : vector<16x16xf32>
    %cst_12 = arith.constant dense<0xFF800000> : vector<16xf32>
    %23 = vector.multi_reduction <maximumf>, %22, %cst_12 [1] : vector<16x16xf32> to vector<16xf32>
    %24 = vector.shape_cast %23 : vector<16xf32> to vector<16x1xf32>
    %25 = vector.broadcast %24 : vector<16x1xf32> to vector<16x16xf32>
    %26 = arith.subf %22, %25 : vector<16x16xf32>
    %27 = math.exp %26 : vector<16x16xf32>
    %cst_13 = arith.constant dense<0.000000e+00> : vector<16xf32>
    %28 = vector.multi_reduction <add>, %27, %cst_13 [1] : vector<16x16xf32> to vector<16xf32>
    %29 = vector.shape_cast %28 : vector<16xf32> to vector<16x1xf32>
    %30 = tpu.reciprocal %29 {approx = true} : vector<16x1xf32> -> vector<16x1xf32>
    %31 = vector.broadcast %30 : vector<16x1xf32> to vector<16x16xf32>
    %32 = arith.mulf %27, %31 : vector<16x16xf32>
    %33 = vector.extract_strided_slice %3 {offsets = [6, 0], sizes = [1, 32], strides = [1, 1]} : vector<10x64xf32> to vector<1x32xf32>
    %34 = vector.broadcast %33 : vector<1x32xf32> to vector<16x32xf32>
    %35 = arith.mulf %14, %34 : vector<16x32xf32>
    %cst_14 = arith.constant dense<0.000000e+00> : vector<16x32xf32>
    %36 = tpu.matmul %32, %35, %cst_14 {dimension_numbers = #tpu.dot_dimension_numbers<[1], [0], [0], [1], [0, 0, 1, 1], [], []>} : vector<16x16xf32>, vector<16x32xf32>, vector<16x32xf32> -> vector<16x32xf32>
    %37 = arith.addf %15, %36 : vector<16x32xf32>
    %38 = vector.extract_strided_slice %12 {offsets = [0, 8], sizes = [16, 8], strides = [1, 1]} : vector<16x32xf32> to vector<16x8xf32>
    %39 = vector.extract_strided_slice %13 {offsets = [0, 8], sizes = [16, 8], strides = [1, 1]} : vector<16x32xf32> to vector<16x8xf32>
    %40 = tpu.transpose %39, [1, 0] : vector<16x8xf32> -> vector<8x16xf32>
    %cst_15 = arith.constant dense<0.000000e+00> : vector<16x16xf32>
    %41 = tpu.matmul %38, %40, %cst_15 {dimension_numbers = #tpu.dot_dimension_numbers<[1], [0], [0], [1], [0, 0, 1, 1], [], []>} : vector<16x8xf32>, vector<8x16xf32>, vector<16x16xf32> -> vector<16x16xf32>
    %cst_16 = arith.constant 0.353553385 : f32
    %42 = vector.broadcast %cst_16 : f32 to vector<16x16xf32>
    %43 = arith.mulf %41, %42 : vector<16x16xf32>
    %44 = arith.addf %43, %1 : vector<16x16xf32>
    %cst_17 = arith.constant dense<0xFF800000> : vector<16xf32>
    %45 = vector.multi_reduction <maximumf>, %44, %cst_17 [1] : vector<16x16xf32> to vector<16xf32>
    %46 = vector.shape_cast %45 : vector<16xf32> to vector<16x1xf32>
    %47 = vector.broadcast %46 : vector<16x1xf32> to vector<16x16xf32>
    %48 = arith.subf %44, %47 : vector<16x16xf32>
    %49 = math.exp %48 : vector<16x16xf32>
    %cst_18 = arith.constant dense<0.000000e+00> : vector<16xf32>
    %50 = vector.multi_reduction <add>, %49, %cst_18 [1] : vector<16x16xf32> to vector<16xf32>
    %51 = vector.shape_cast %50 : vector<16xf32> to vector<16x1xf32>
    %52 = tpu.reciprocal %51 {approx = true} : vector<16x1xf32> -> vector<16x1xf32>
    %53 = vector.broadcast %52 : vector<16x1xf32> to vector<16x16xf32>
    %54 = arith.mulf %49, %53 : vector<16x16xf32>
    %55 = vector.extract_strided_slice %3 {offsets = [7, 0], sizes = [1, 32], strides = [1, 1]} : vector<10x64xf32> to vector<1x32xf32>
    %56 = vector.broadcast %55 : vector<1x32xf32> to vector<16x32xf32>
    %57 = arith.mulf %14, %56 : vector<16x32xf32>
    %cst_19 = arith.constant dense<0.000000e+00> : vector<16x32xf32>
    %58 = tpu.matmul %54, %57, %cst_19 {dimension_numbers = #tpu.dot_dimension_numbers<[1], [0], [0], [1], [0, 0, 1, 1], [], []>} : vector<16x16xf32>, vector<16x32xf32>, vector<16x32xf32> -> vector<16x32xf32>
    %59 = arith.addf %37, %58 : vector<16x32xf32>
    %60 = vector.extract_strided_slice %12 {offsets = [0, 16], sizes = [16, 8], strides = [1, 1]} : vector<16x32xf32> to vector<16x8xf32>
    %61 = vector.extract_strided_slice %13 {offsets = [0, 16], sizes = [16, 8], strides = [1, 1]} : vector<16x32xf32> to vector<16x8xf32>
    %62 = tpu.transpose %61, [1, 0] : vector<16x8xf32> -> vector<8x16xf32>
    %cst_20 = arith.constant dense<0.000000e+00> : vector<16x16xf32>
    %63 = tpu.matmul %60, %62, %cst_20 {dimension_numbers = #tpu.dot_dimension_numbers<[1], [0], [0], [1], [0, 0, 1, 1], [], []>} : vector<16x8xf32>, vector<8x16xf32>, vector<16x16xf32> -> vector<16x16xf32>
    %cst_21 = arith.constant 0.353553385 : f32
    %64 = vector.broadcast %cst_21 : f32 to vector<16x16xf32>
    %65 = arith.mulf %63, %64 : vector<16x16xf32>
    %66 = arith.addf %65, %1 : vector<16x16xf32>
    %cst_22 = arith.constant dense<0xFF800000> : vector<16xf32>
    %67 = vector.multi_reduction <maximumf>, %66, %cst_22 [1] : vector<16x16xf32> to vector<16xf32>
    %68 = vector.shape_cast %67 : vector<16xf32> to vector<16x1xf32>
    %69 = vector.broadcast %68 : vector<16x1xf32> to vector<16x16xf32>
    %70 = arith.subf %66, %69 : vector<16x16xf32>
    %71 = math.exp %70 : vector<16x16xf32>
    %cst_23 = arith.constant dense<0.000000e+00> : vector<16xf32>
    %72 = vector.multi_reduction <add>, %71, %cst_23 [1] : vector<16x16xf32> to vector<16xf32>
    %73 = vector.shape_cast %72 : vector<16xf32> to vector<16x1xf32>
    %74 = tpu.reciprocal %73 {approx = true} : vector<16x1xf32> -> vector<16x1xf32>
    %75 = vector.broadcast %74 : vector<16x1xf32> to vector<16x16xf32>
    %76 = arith.mulf %71, %75 : vector<16x16xf32>
    %77 = vector.extract_strided_slice %3 {offsets = [8, 0], sizes = [1, 32], strides = [1, 1]} : vector<10x64xf32> to vector<1x32xf32>
    %78 = vector.broadcast %77 : vector<1x32xf32> to vector<16x32xf32>
    %79 = arith.mulf %14, %78 : vector<16x32xf32>
    %cst_24 = arith.constant dense<0.000000e+00> : vector<16x32xf32>
    %80 = tpu.matmul %76, %79, %cst_24 {dimension_numbers = #tpu.dot_dimension_numbers<[1], [0], [0], [1], [0, 0, 1, 1], [], []>} : vector<16x16xf32>, vector<16x32xf32>, vector<16x32xf32> -> vector<16x32xf32>
    %81 = arith.addf %59, %80 : vector<16x32xf32>
    %82 = vector.extract_strided_slice %12 {offsets = [0, 24], sizes = [16, 8], strides = [1, 1]} : vector<16x32xf32> to vector<16x8xf32>
    %83 = vector.extract_strided_slice %13 {offsets = [0, 24], sizes = [16, 8], strides = [1, 1]} : vector<16x32xf32> to vector<16x8xf32>
    %84 = tpu.transpose %83, [1, 0] : vector<16x8xf32> -> vector<8x16xf32>
    %cst_25 = arith.constant dense<0.000000e+00> : vector<16x16xf32>
    %85 = tpu.matmul %82, %84, %cst_25 {dimension_numbers = #tpu.dot_dimension_numbers<[1], [0], [0], [1], [0, 0, 1, 1], [], []>} : vector<16x8xf32>, vector<8x16xf32>, vector<16x16xf32> -> vector<16x16xf32>
    %cst_26 = arith.constant 0.353553385 : f32
    %86 = vector.broadcast %cst_26 : f32 to vector<16x16xf32>
    %87 = arith.mulf %85, %86 : vector<16x16xf32>
    %88 = arith.addf %87, %1 : vector<16x16xf32>
    %cst_27 = arith.constant dense<0xFF800000> : vector<16xf32>
    %89 = vector.multi_reduction <maximumf>, %88, %cst_27 [1] : vector<16x16xf32> to vector<16xf32>
    %90 = vector.shape_cast %89 : vector<16xf32> to vector<16x1xf32>
    %91 = vector.broadcast %90 : vector<16x1xf32> to vector<16x16xf32>
    %92 = arith.subf %88, %91 : vector<16x16xf32>
    %93 = math.exp %92 : vector<16x16xf32>
    %cst_28 = arith.constant dense<0.000000e+00> : vector<16xf32>
    %94 = vector.multi_reduction <add>, %93, %cst_28 [1] : vector<16x16xf32> to vector<16xf32>
    %95 = vector.shape_cast %94 : vector<16xf32> to vector<16x1xf32>
    %96 = tpu.reciprocal %95 {approx = true} : vector<16x1xf32> -> vector<16x1xf32>
    %97 = vector.broadcast %96 : vector<16x1xf32> to vector<16x16xf32>
    %98 = arith.mulf %93, %97 : vector<16x16xf32>
    %99 = vector.extract_strided_slice %3 {offsets = [9, 0], sizes = [1, 32], strides = [1, 1]} : vector<10x64xf32> to vector<1x32xf32>
    %100 = vector.broadcast %99 : vector<1x32xf32> to vector<16x32xf32>
    %101 = arith.mulf %14, %100 : vector<16x32xf32>
    %cst_29 = arith.constant dense<0.000000e+00> : vector<16x32xf32>
    %102 = tpu.matmul %98, %101, %cst_29 {dimension_numbers = #tpu.dot_dimension_numbers<[1], [0], [0], [1], [0, 0, 1, 1], [], []>} : vector<16x16xf32>, vector<16x32xf32>, vector<16x32xf32> -> vector<16x32xf32>
    %103 = arith.addf %81, %102 : vector<16x32xf32>
    %c0_30 = arith.constant 0 : index
    %c96 = arith.constant 96 : index
    %104 = vector.load %arg4[%c0_30, %c96] : memref<32x128xf32, #tpu.memory_space<vmem>>, vector<32x32xf32>
    %cst_31 = arith.constant dense<0.000000e+00> : vector<16x32xf32>
    %105 = tpu.matmul %103, %104, %cst_31 {dimension_numbers = #tpu.dot_dimension_numbers<[1], [0], [0], [1], [0, 0, 1, 1], [], []>} : vector<16x32xf32>, vector<32x32xf32>, vector<16x32xf32> -> vector<16x32xf32>
    %106 = vector.broadcast %2 : vector<16x1xf32> to vector<16x32xf32>
    %107 = arith.mulf %105, %106 : vector<16x32xf32>
    %108 = arith.addf %107, %0 : vector<16x32xf32>
    %cst_32 = arith.constant dense<0.000000e+00> : vector<16xf32>
    %109 = vector.multi_reduction <add>, %108, %cst_32 [1] : vector<16x32xf32> to vector<16xf32>
    %110 = vector.shape_cast %109 : vector<16xf32> to vector<16x1xf32>
    %cst_33 = arith.constant 3.200000e+01 : f32
    %111 = vector.broadcast %cst_33 : f32 to vector<16x1xf32>
    %112 = arith.divf %110, %111 : vector<16x1xf32>
    %113 = vector.broadcast %112 : vector<16x1xf32> to vector<16x32xf32>
    %114 = arith.subf %108, %113 : vector<16x32xf32>
    %115 = arith.mulf %114, %114 : vector<16x32xf32>
    %cst_34 = arith.constant dense<0.000000e+00> : vector<16xf32>
    %116 = vector.multi_reduction <add>, %115, %cst_34 [1] : vector<16x32xf32> to vector<16xf32>
    %117 = vector.shape_cast %116 : vector<16xf32> to vector<16x1xf32>
    %cst_35 = arith.constant 3.200000e+01 : f32
    %118 = vector.broadcast %cst_35 : f32 to vector<16x1xf32>
    %119 = arith.divf %117, %118 : vector<16x1xf32>
    %cst_36 = arith.constant 9.99999974E-6 : f32
    %120 = vector.broadcast %cst_36 : f32 to vector<16x1xf32>
    %121 = arith.addf %119, %120 : vector<16x1xf32>
    %122 = math.rsqrt %121 : vector<16x1xf32>
    %123 = vector.broadcast %122 : vector<16x1xf32> to vector<16x32xf32>
    %124 = arith.mulf %114, %123 : vector<16x32xf32>
    %125 = vector.broadcast %6 : vector<1x32xf32> to vector<16x32xf32>
    %126 = arith.mulf %124, %125 : vector<16x32xf32>
    %127 = vector.broadcast %7 : vector<1x32xf32> to vector<16x32xf32>
    %128 = arith.addf %126, %127 : vector<16x32xf32>
    %c0_37 = arith.constant 0 : index
    %c0_38 = arith.constant 0 : index
    %129 = vector.load %arg5[%c0_37, %c0_38] : memref<32x64xf32, #tpu.memory_space<vmem>>, vector<32x64xf32>
    %cst_39 = arith.constant dense<0.000000e+00> : vector<16x64xf32>
    %130 = tpu.matmul %128, %129, %cst_39 {dimension_numbers = #tpu.dot_dimension_numbers<[1], [0], [0], [1], [0, 0, 1, 1], [], []>} : vector<16x32xf32>, vector<32x64xf32>, vector<16x64xf32> -> vector<16x64xf32>
    %131 = vector.broadcast %4 : vector<1x64xf32> to vector<16x64xf32>
    %132 = arith.addf %130, %131 : vector<16x64xf32>
    %cst_40 = arith.constant 5.000000e-01 : f32
    %133 = vector.broadcast %cst_40 : f32 to vector<16x64xf32>
    %134 = arith.mulf %133, %132 : vector<16x64xf32>
    %cst_41 = arith.constant 0.707106769 : f32
    %135 = vector.broadcast %cst_41 : f32 to vector<16x64xf32>
    %136 = arith.mulf %132, %135 : vector<16x64xf32>
    %cst_42 = arith.constant 0.000000e+00 : f32
    %137 = vector.broadcast %cst_42 : f32 to vector<16x64xf32>
    %138 = arith.cmpf oge, %136, %137 : vector<16x64xf32>
    %cst_43 = arith.constant 1.000000e+00 : f32
    %cst_44 = arith.constant -1.000000e+00 : f32
    %139 = vector.broadcast %cst_43 : f32 to vector<16x64xf32>
    %140 = vector.broadcast %cst_44 : f32 to vector<16x64xf32>
    %141 = arith.select %138, %139, %140 : vector<16x64xi1>, vector<16x64xf32>
    %142 = math.absf %136 : vector<16x64xf32>
    %cst_45 = arith.constant 0.327591091 : f32
    %143 = vector.broadcast %cst_45 : f32 to vector<16x64xf32>
    %144 = arith.mulf %143, %142 : vector<16x64xf32>
    %cst_46 = arith.constant 1.000000e+00 : f32
    %145 = vector.broadcast %cst_46 : f32 to vector<16x64xf32>
    %146 = arith.addf %145, %144 : vector<16x64xf32>
    %cst_47 = arith.constant 1.000000e+00 : f32
    %147 = vector.broadcast %cst_47 : f32 to vector<16x64xf32>
    %148 = arith.divf %147, %146 : vector<16x64xf32>
    %cst_48 = arith.constant 1.06140542 : f32
    %149 = vector.broadcast %cst_48 : f32 to vector<16x64xf32>
    %150 = arith.mulf %149, %148 : vector<16x64xf32>
    %cst_49 = arith.constant -1.45315206 : f32
    %151 = vector.broadcast %cst_49 : f32 to vector<16x64xf32>
    %152 = arith.addf %150, %151 : vector<16x64xf32>
    %153 = arith.mulf %152, %148 : vector<16x64xf32>
    %cst_50 = arith.constant 1.42141378 : f32
    %154 = vector.broadcast %cst_50 : f32 to vector<16x64xf32>
    %155 = arith.addf %153, %154 : vector<16x64xf32>
    %156 = arith.mulf %155, %148 : vector<16x64xf32>
    %cst_51 = arith.constant -0.284496725 : f32
    %157 = vector.broadcast %cst_51 : f32 to vector<16x64xf32>
    %158 = arith.addf %156, %157 : vector<16x64xf32>
    %159 = arith.mulf %158, %148 : vector<16x64xf32>
    %cst_52 = arith.constant 0.254829586 : f32
    %160 = vector.broadcast %cst_52 : f32 to vector<16x64xf32>
    %161 = arith.addf %159, %160 : vector<16x64xf32>
    %162 = arith.mulf %161, %148 : vector<16x64xf32>
    %cst_53 = arith.constant 0.000000e+00 : f32
    %163 = vector.broadcast %cst_53 : f32 to vector<16x64xf32>
    %164 = arith.subf %163, %142 : vector<16x64xf32>
    %165 = arith.mulf %164, %142 : vector<16x64xf32>
    %166 = math.exp %165 : vector<16x64xf32>
    %167 = arith.mulf %162, %166 : vector<16x64xf32>
    %cst_54 = arith.constant 1.000000e+00 : f32
    %168 = vector.broadcast %cst_54 : f32 to vector<16x64xf32>
    %169 = arith.subf %168, %167 : vector<16x64xf32>
    %170 = arith.mulf %141, %169 : vector<16x64xf32>
    %cst_55 = arith.constant 1.000000e+00 : f32
    %171 = vector.broadcast %cst_55 : f32 to vector<16x64xf32>
    %172 = arith.addf %171, %170 : vector<16x64xf32>
    %173 = arith.mulf %134, %172 : vector<16x64xf32>
    %c0_56 = arith.constant 0 : index
    %c0_57 = arith.constant 0 : index
    %174 = vector.load %arg6[%c0_56, %c0_57] : memref<64x32xf32, #tpu.memory_space<vmem>>, vector<64x32xf32>
    %cst_58 = arith.constant dense<0.000000e+00> : vector<16x32xf32>
    %175 = tpu.matmul %173, %174, %cst_58 {dimension_numbers = #tpu.dot_dimension_numbers<[1], [0], [0], [1], [0, 0, 1, 1], [], []>} : vector<16x64xf32>, vector<64x32xf32>, vector<16x32xf32> -> vector<16x32xf32>
    %176 = vector.broadcast %5 : vector<1x32xf32> to vector<16x32xf32>
    %177 = arith.addf %175, %176 : vector<16x32xf32>
    %178 = arith.addf %177, %128 : vector<16x32xf32>
    %cst_59 = arith.constant dense<0.000000e+00> : vector<16xf32>
    %179 = vector.multi_reduction <add>, %178, %cst_59 [1] : vector<16x32xf32> to vector<16xf32>
    %180 = vector.shape_cast %179 : vector<16xf32> to vector<16x1xf32>
    %cst_60 = arith.constant 3.200000e+01 : f32
    %181 = vector.broadcast %cst_60 : f32 to vector<16x1xf32>
    %182 = arith.divf %180, %181 : vector<16x1xf32>
    %183 = vector.broadcast %182 : vector<16x1xf32> to vector<16x32xf32>
    %184 = arith.subf %178, %183 : vector<16x32xf32>
    %185 = arith.mulf %184, %184 : vector<16x32xf32>
    %cst_61 = arith.constant dense<0.000000e+00> : vector<16xf32>
    %186 = vector.multi_reduction <add>, %185, %cst_61 [1] : vector<16x32xf32> to vector<16xf32>
    %187 = vector.shape_cast %186 : vector<16xf32> to vector<16x1xf32>
    %cst_62 = arith.constant 3.200000e+01 : f32
    %188 = vector.broadcast %cst_62 : f32 to vector<16x1xf32>
    %189 = arith.divf %187, %188 : vector<16x1xf32>
    %cst_63 = arith.constant 9.99999974E-6 : f32
    %190 = vector.broadcast %cst_63 : f32 to vector<16x1xf32>
    %191 = arith.addf %189, %190 : vector<16x1xf32>
    %192 = math.rsqrt %191 : vector<16x1xf32>
    %193 = vector.broadcast %192 : vector<16x1xf32> to vector<16x32xf32>
    %194 = arith.mulf %184, %193 : vector<16x32xf32>
    %195 = vector.broadcast %8 : vector<1x32xf32> to vector<16x32xf32>
    %196 = arith.mulf %194, %195 : vector<16x32xf32>
    %197 = vector.broadcast %9 : vector<1x32xf32> to vector<16x32xf32>
    %198 = arith.addf %196, %197 : vector<16x32xf32>
    %199 = vector.broadcast %2 : vector<16x1xf32> to vector<16x32xf32>
    %200 = arith.mulf %198, %199 : vector<16x32xf32>
    %c0_64 = arith.constant 0 : index
    %c0_65 = arith.constant 0 : index
    %201 = vector.load %arg8[%c0_64, %c0_65] : memref<16x32xf32, #tpu.memory_space<vmem>>, vector<16x32xf32>
    tpu.vector_store %arg8[%c0_64, %c0_65], %200 {strides = array<i32>} : memref<16x32xf32, #tpu.memory_space<vmem>>, vector<16x32xf32>,
    return
  }
  func.func @transform_0(%arg0: i32) -> (i32, i32) {
    %c0_i32 = arith.constant 0 : i32
    %c0_i32_0 = arith.constant 0 : i32
    %c0_i32_1 = arith.constant 0 : i32
    return %c0_i32, %c0_i32_0 : i32, i32
  }
  func.func @transform_1(%arg0: i32) -> (i32, i32) {
    %c0_i32 = arith.constant 0 : i32
    %c0_i32_0 = arith.constant 0 : i32
    %c0_i32_1 = arith.constant 0 : i32
    return %c0_i32, %c0_i32_0 : i32, i32
  }
  func.func @transform_2(%arg0: i32) -> (i32, i32) {
    %c0_i32 = arith.constant 0 : i32
    %c0_i32_0 = arith.constant 0 : i32
    %c0_i32_1 = arith.constant 0 : i32
    return %c0_i32, %c0_i32_0 : i32, i32
  }
  func.func @transform_3(%arg0: i32) -> (i32, i32) {
    %c0_i32 = arith.constant 0 : i32
    %c0_i32_0 = arith.constant 0 : i32
    %c0_i32_1 = arith.constant 0 : i32
    return %c0_i32, %c0_i32_0 : i32, i32
  }
  func.func @transform_4(%arg0: i32) -> (i32, i32) {
    %c0_i32 = arith.constant 0 : i32
    %c0_i32_0 = arith.constant 0 : i32
    %c0_i32_1 = arith.constant 0 : i32
    return %c0_i32, %c0_i32_0 : i32, i32
  }
  func.func @transform_5(%arg0: i32) -> (i32, i32) {
    %c0_i32 = arith.constant 0 : i32
    %c0_i32_0 = arith.constant 0 : i32
    %c0_i32_1 = arith.constant 0 : i32
    return %c0_i32, %c0_i32_0 : i32, i32
  }
  func.func @transform_6(%arg0: i32) -> (i32, i32) {
    %c0_i32 = arith.constant 0 : i32
    %c0_i32_0 = arith.constant 0 : i32
    %c0_i32_1 = arith.constant 0 : i32
    return %c0_i32, %c0_i32_0 : i32, i32
  }
  func.func @transform_7(%arg0: i32) -> (i32, i32) {
    %c0_i32 = arith.constant 0 : i32
    %c0_i32_0 = arith.constant 0 : i32
    %c0_i32_1 = arith.constant 0 : i32
    return %c0_i32, %c0_i32_0 : i32, i32
  }
}

</mosaic_0001>

<llo_original>
// kernel: tpu_custom_call.1
$region0: #{tpu_custom_call.1}
  #allocation0 [shape = 'u32[]', space=smem, size = 0x4, offset = 0x4, fixed_abs, tag = 'smem constant byte address 0x4 - core index']
  #allocation1 [shape = 'u32[144,128]{1,0:T(1,128)}', space=vmem, size = 0x12000, scoped, tag = 'internal scratch']
  %s0 = inlined_call_operand.vmem [shape: f32[16,32], index: 0, kind: input, shape index: {}]
  %s1 = inlined_call_operand.vmem [shape: f32[16,16], index: 1, kind: input, shape index: {}]
  %s2 = inlined_call_operand.vmem [shape: f32[16,1], index: 2, kind: input, shape index: {}]
  %s3 = inlined_call_operand.vmem [shape: f32[32,128], index: 3, kind: input, shape index: {}]
  %s4 = inlined_call_operand.vmem [shape: f32[32,64], index: 4, kind: input, shape index: {}]
  %s5 = inlined_call_operand.vmem [shape: f32[64,32], index: 5, kind: input, shape index: {}]
  %s6 = inlined_call_operand.vmem [shape: f32[10,64], index: 6, kind: input, shape index: {}]
  %s7 = inlined_call_operand.hbm [shape: f32[16,32], index: 7, kind: output, shape index: {}]
  %s8 = sld [smem:[#allocation0]]
  $region38: #{tpu_custom_call.1} parent=0
    _
  %s10 = ssub.s32 1, %s8
  %s11 = scalar_select 0, %s10, %s8
  $region1: #{tpu_custom_call.1} parent=0
    #allocation2 [shape = 'u8[8192]{0}', space=vmem, size = 0x2000, scoped, tag = 'output window, operand 0, single buffered']
    #allocation3 [shape = 's32[1]{0}', space=sflag, size = 0x4, scoped, tag = 'scoped memory for tpu_custom_call.1']
    %12 = vsyncpa [#allocation3], 0
    // Predicated region
    $region2: #{tpu_custom_call.1} parent=1 // pred_check
      _
    $region3: #{tpu_custom_call.1} parent=1 // pred_check_branch
      %14 = sbr.rel (0) target = $region5
    $region4: #{tpu_custom_call.1} parent=1 // pred_region
      _
    $region5: #{tpu_custom_call.1} parent=1 // pred_fallthru
      _
    // Predicated region
    $region6: #{tpu_custom_call.1} parent=1 // pred_check
      _
    $region7: #{tpu_custom_call.1} parent=1 // pred_check_branch
      %16 = sbr.rel (0) target = $region9
    $region8: #{tpu_custom_call.1} parent=1 // pred_region
      _
    $region9: #{tpu_custom_call.1} parent=1 // pred_fallthru
      _
    // Predicated region
    $region10: #{tpu_custom_call.1} parent=1 // pred_check
      _
    $region11: #{tpu_custom_call.1} parent=1 // pred_check_branch
      %18 = sbr.rel (0) target = $region13
    $region12: #{tpu_custom_call.1} parent=1 // pred_region
      _
    $region13: #{tpu_custom_call.1} parent=1 // pred_fallthru
      _
    // Predicated region
    $region14: #{tpu_custom_call.1} parent=1 // pred_check
      _
    $region15: #{tpu_custom_call.1} parent=1 // pred_check_branch
      %20 = sbr.rel (0) target = $region17
    $region16: #{tpu_custom_call.1} parent=1 // pred_region
      _
    $region17: #{tpu_custom_call.1} parent=1 // pred_fallthru
      _
    // Predicated region
    $region18: #{tpu_custom_call.1} parent=1 // pred_check
      _
    $region19: #{tpu_custom_call.1} parent=1 // pred_check_branch
      %22 = sbr.rel (0) target = $region21
    $region20: #{tpu_custom_call.1} parent=1 // pred_region
      _
    $region21: #{tpu_custom_call.1} parent=1 // pred_fallthru
      _
    // Predicated region
    $region22: #{tpu_custom_call.1} parent=1 // pred_check
      _
    $region23: #{tpu_custom_call.1} parent=1 // pred_check_branch
      %24 = sbr.rel (0) target = $region25
    $region24: #{tpu_custom_call.1} parent=1 // pred_region
      _
    $region25: #{tpu_custom_call.1} parent=1 // pred_fallthru
      _
    // Predicated region
    $region26: #{tpu_custom_call.1} parent=1 // pred_check
      _
    $region27: #{tpu_custom_call.1} parent=1 // pred_check_branch
      %26 = sbr.rel (0) target = $region29
    $region28: #{tpu_custom_call.1} parent=1 // pred_region
      _
    $region29: #{tpu_custom_call.1} parent=1 // pred_fallthru
      _
    %v27 = vld [vmem:[%s0] sm:$0xff]
    %v28 = vld [vmem:[%s0 + $0x8] sm:$0xff]
    %v29 = vld [vmem:[%s1] sm:$0xff]
    %v30 = vld [vmem:[%s1 + $0x8] sm:$0xff]
    %v31 = vld [vmem:[%s2] sm:$0xff]
    %v32 = vld [vmem:[%s2 + $0x8] sm:$0xff]
    %v33 = vld [vmem:[%s6] sm:$0xff]
    %v34 = vld [vmem:[%s6 + $0x8] sm:$0x3]
    %v35 = vld [vmem:[%s3] sm:$0xff]
    %v36 = vld [vmem:[%s3 + $0x8] sm:$0xff]
    %v37 = vld [vmem:[%s3 + $0x10] sm:$0xff]
    %v38 = vld [vmem:[%s3 + $0x18] sm:$0xff]
    %vm39 = vcmask 261120
    %v41 = vsel %vm39, %v27, 0
    %v44 = vsel %vm39, %v28, 0
    %46 = vmatprep.subr.mxu0 0.0
    %47 = vmatpush1.msra.mxu0 0.0
    %48 = vmatprep.subr.mxu0 0.0
    %49 = vmatpush1.msra.mxu0 0.0
    %50 = vmatprep.subr.mxu0 0.0
    %51 = vmatpush1.msra.mxu0 0.0
    %52 = vmatprep.subr.mxu0 0.0
    %53 = vmatpush1.msra.mxu0 0.0
    %54 = vmatprep.subr.mxu0 0.0
    %55 = vmatpush1.msra.mxu0 0.0
    %56 = vmatprep.subr.mxu0 0.0
    %57 = vmatpush1.msra.mxu0 0.0
    %58 = vmatprep.subr.mxu0 0.0
    %59 = vmatpush1.msra.mxu0 0.0
    %60 = vmatprep.subr.mxu0 0.0
    %61 = vmatpush1.msra.mxu0 0.0
    %62 = vmatprep.subr.mxu0 0.0
    %63 = vmatpush1.msra.mxu0 0.0
    %64 = vmatprep.subr.mxu0 0.0
    %65 = vmatpush1.msra.mxu0 0.0
    %66 = vmatprep.subr.mxu0 0.0
    %67 = vmatpush1.msra.mxu0 0.0
    %68 = vmatprep.subr.mxu0 0.0
    %69 = vmatpush1.msra.mxu0 0.0
    %70 = vmatprep.subr.mxu0 0.0
    %71 = vmatpush1.msra.mxu0 %v38
    %72 = vmatprep.subr.mxu0 0.0
    %73 = vmatpush1.msra.mxu0 %v37
    %74 = vmatprep.subr.mxu0 0.0
    %75 = vmatpush1.msra.mxu0 %v36
    %76 = vmatprep.subr.mxu0 0.0
    %77 = vmatpush1.msra.mxu0 %v35
    %78 = vmatprep.subr.mxu0 0.0
    %79 = vmatpush2.msra.mxu0 0.0
    %80 = vmatprep.subr.mxu0 0.0
    %81 = vmatpush2.msra.mxu0 0.0
    %82 = vmatprep.subr.mxu0 0.0
    %83 = vmatpush2.msra.mxu0 0.0
    %84 = vmatprep.subr.mxu0 0.0
    %85 = vmatpush2.msra.mxu0 0.0
    %86 = vmatprep.subr.mxu0 0.0
    %87 = vmatpush2.msra.mxu0 0.0
    %88 = vmatprep.subr.mxu0 0.0
    %89 = vmatpush2.msra.mxu0 0.0
    %90 = vmatprep.subr.mxu0 0.0
    %91 = vmatpush2.msra.mxu0 0.0
    %92 = vmatprep.subr.mxu0 0.0
    %93 = vmatpush2.msra.mxu0 0.0
    %94 = vmatprep.subr.mxu0 0.0
    %95 = vmatpush2.msra.mxu0 0.0
    %96 = vmatprep.subr.mxu0 0.0
    %97 = vmatpush2.msra.mxu0 0.0
    %98 = vmatprep.subr.mxu0 0.0
    %99 = vmatpush2.msra.mxu0 0.0
    %100 = vmatprep.subr.mxu0 0.0
    %101 = vmatpush2.msra.mxu0 0.0
    %102 = vmatprep.subr.mxu0 0.0
    %103 = vmatpush2.msra.mxu0 0.0
    %104 = vmatprep.subr.mxu0 0.0
    %105 = vmatpush2.msra.mxu0 0.0
    %106 = vmatprep.subr.mxu0 0.0
    %107 = vmatpush2.msra.mxu0 0.0
    %108 = vmatprep.subr.mxu0 0.0
    %109 = vmatpush2.msra.mxu0 0.0
    %110 = vmatprep.mubr.f32.mxu0 0.0
    %111 = vmatmul.mubr.f32.gmra.mxu0 %v41
    %v112 = vpop.f32.mrf.mxu0
    %v113 = vadd.f32 0.0, %v112
    %v114 = vpop.f32.mrf.mxu0
    %115 = vmatprep.mubr.f32.mxu0 0.0
    %116 = vmatmul.mubr.f32.gmra.mxu0 %v44
    %v117 = vpop.f32.mrf.mxu0
    %v118 = vadd.f32 0.0, %v117
    %v119 = vpop.f32.mrf.mxu0
    %120 = vdwg.mxu0
    %123 = vrot.lane.b32.xlu0 %v113, 96
    %v124 = vpop.permute.xlu0 %123
    %125 = vrot.lane.b32.xlu0 %v118, 96
    %v126 = vpop.permute.xlu0 %125
    %vm127 = vcmask 64512
    %v128 = vsel %vm127, %v113, 0
    %v130 = vsel %vm127, %v118, 0
    %v132 = vsel %vm127, %v124, 0
    %v134 = vsel %vm127, %v126, 0
    %136 = vmatprep.subr.mxu0 0.0
    %137 = vmatpush1.xpose.msra.mxu0 0.0
    %138 = vmatprep.subr.mxu0 0.0
    %139 = vmatpush1.xpose.msra.mxu0 0.0
    %140 = vmatprep.subr.mxu0 0.0
    %141 = vmatpush1.xpose.msra.mxu0 0.0
    %142 = vmatprep.subr.mxu0 0.0
    %143 = vmatpush1.xpose.msra.mxu0 0.0
    %144 = vmatprep.subr.mxu0 0.0
    %145 = vmatpush1.xpose.msra.mxu0 0.0
    %146 = vmatprep.subr.mxu0 0.0
    %147 = vmatpush1.xpose.msra.mxu0 0.0
    %148 = vmatprep.subr.mxu0 0.0
    %149 = vmatpush1.xpose.msra.mxu0 0.0
    %150 = vmatprep.subr.mxu0 0.0
    %151 = vmatpush1.xpose.msra.mxu0 0.0
    %152 = vmatprep.subr.mxu0 0.0
    %153 = vmatpush1.xpose.msra.mxu0 0.0
    %154 = vmatprep.subr.mxu0 0.0
    %155 = vmatpush1.xpose.msra.mxu0 0.0
    %156 = vmatprep.subr.mxu0 0.0
    %157 = vmatpush1.xpose.msra.mxu0 0.0
    %158 = vmatprep.subr.mxu0 0.0
    %159 = vmatpush1.xpose.msra.mxu0 0.0
    %160 = vmatprep.subr.mxu0 0.0
    %161 = vmatpush1.xpose.msra.mxu0 0.0
    %162 = vmatprep.subr.mxu0 0.0
    %163 = vmatpush1.xpose.msra.mxu0 0.0
    %164 = vmatprep.subr.mxu0 0.0
    %165 = vmatpush1.xpose.msra.mxu0 %v134
    %166 = vmatprep.subr.mxu0 0.0
    %167 = vmatpush1.xpose.msra.mxu0 %v132
    %168 = vmatprep.subr.mxu0 0.0
    %169 = vmatpush2.xpose.msra.mxu0 0.0
    %170 = vmatprep.subr.mxu0 0.0
    %171 = vmatpush2.xpose.msra.mxu0 0.0
    %172 = vmatprep.subr.mxu0 0.0
    %173 = vmatpush2.xpose.msra.mxu0 0.0
    %174 = vmatprep.subr.mxu0 0.0
    %175 = vmatpush2.xpose.msra.mxu0 0.0
    %176 = vmatprep.subr.mxu0 0.0
    %177 = vmatpush2.xpose.msra.mxu0 0.0
    %178 = vmatprep.subr.mxu0 0.0
    %179 = vmatpush2.xpose.msra.mxu0 0.0
    %180 = vmatprep.subr.mxu0 0.0
    %181 = vmatpush2.xpose.msra.mxu0 0.0
    %182 = vmatprep.subr.mxu0 0.0
    %183 = vmatpush2.xpose.msra.mxu0 0.0
    %184 = vmatprep.subr.mxu0 0.0
    %185 = vmatpush2.xpose.msra.mxu0 0.0
    %186 = vmatprep.subr.mxu0 0.0
    %187 = vmatpush2.xpose.msra.mxu0 0.0
    %188 = vmatprep.subr.mxu0 0.0
    %189 = vmatpush2.xpose.msra.mxu0 0.0
    %190 = vmatprep.subr.mxu0 0.0
    %191 = vmatpush2.xpose.msra.mxu0 0.0
    %192 = vmatprep.subr.mxu0 0.0
    %193 = vmatpush2.xpose.msra.mxu0 0.0
    %194 = vmatprep.subr.mxu0 0.0
    %195 = vmatpush2.xpose.msra.mxu0 0.0
    %196 = vmatprep.subr.mxu0 0.0
    %197 = vmatpush2.xpose.msra.mxu0 0.0
    %198 = vmatprep.subr.mxu0 0.0
    %199 = vmatpush2.xpose.msra.mxu0 0.0
    %200 = vmatprep.mubr.f32.mxu0 0.0
    %201 = vmatmul.mubr.f32.gmra.mxu0 %v128
    %v202 = vpop.f32.mrf.mxu0
    %v203 = vadd.f32 0.0, %v202
    %v204 = vpop.f32.mrf.mxu0
    %205 = vmatprep.mubr.f32.mxu0 0.0
    %206 = vmatmul.mubr.f32.gmra.mxu0 %v130
    %v207 = vpop.f32.mrf.mxu0
    %v208 = vadd.f32 0.0, %v207
    %v209 = vpop.f32.mrf.mxu0
    %210 = vdwg.mxu0
    %v211 = vmul.f32 %v203, 0.35355338
    %v212 = vmul.f32 %v208, 0.35355338
    %v213 = vadd.f32 %v211, %v29
    %v214 = vadd.f32 %v212, %v30
    %vm215 = vcmask 130048
    %v216 = vsel %vm215, %v213, -inf
    %217 = vmax.xlane.f32.xlu0 %v216
    %v218 = vpop.xlane.xlu0 %217
    %v219 = vsel %vm215, %v214, -inf
    %220 = vmax.xlane.f32.xlu0 %v219
    %v221 = vpop.xlane.xlu0 %220
    %v222 = vsub.f32 %v213, %v218
    %v223 = vsub.f32 %v214, %v221
    %v224 = vmul.f32 %v222, 1.442695
    %v225 = vpow.pop %v224
    %v226 = vmul.f32 %v223, 1.442695
    %v227 = vpow.pop %v226
    %v228 = vsel %vm215, %v225, 0.0
    %229 = vadd.xlane.f32.xlu0 %v228
    %v230 = vpop.xlane.xlu0 %229
    %v231 = vsel %vm215, %v227, 0.0
    %232 = vadd.xlane.f32.xlu0 %v231
    %v233 = vpop.xlane.xlu0 %232
    %v234 = vrcp.pop %v230
    %v235 = vrcp.pop %v233
    %v236 = vmul.f32 %v225, %v234
    %v237 = vmul.f32 %v227, %v235
    %v238 = vlaneseq
    %v239 = vshrl.u32 %v238, 7
    %v240 = vsub.s32 6, %v239
    %v241 = vrot.slane %v33, %v240
    %243 = vrot.lane.b32.xlu0 %v241, 64
    %v244 = vpop.permute.xlu0 %243
    %v246 = vmul.f32 %v113, %v244
    %v247 = vmul.f32 %v118, %v244
    %248 = vrot.lane.b32.xlu0 %v113, 120
    %v249 = vpop.permute.xlu0 %248
    %250 = vrot.lane.b32.xlu0 %v118, 120
    %v251 = vpop.permute.xlu0 %250
    %252 = vrot.lane.b32.xlu0 %v113, 88
    %v253 = vpop.permute.xlu0 %252
    %254 = vrot.lane.b32.xlu0 %v118, 88
    %v255 = vpop.permute.xlu0 %254
    %v256 = vsel %vm127, %v249, 0
    %v258 = vsel %vm127, %v251, 0
    %v260 = vsel %vm127, %v253, 0
    %v262 = vsel %vm127, %v255, 0
    %264 = vmatprep.subr.mxu0 0.0
    %265 = vmatpush1.xpose.msra.mxu0 0.0
    %266 = vmatprep.subr.mxu0 0.0
    %267 = vmatpush1.xpose.msra.mxu0 0.0
    %268 = vmatprep.subr.mxu0 0.0
    %269 = vmatpush1.xpose.msra.mxu0 0.0
    %270 = vmatprep.subr.mxu0 0.0
    %271 = vmatpush1.xpose.msra.mxu0 0.0
    %272 = vmatprep.subr.mxu0 0.0
    %273 = vmatpush1.xpose.msra.mxu0 0.0
    %274 = vmatprep.subr.mxu0 0.0
    %275 = vmatpush1.xpose.msra.mxu0 0.0
    %276 = vmatprep.subr.mxu0 0.0
    %277 = vmatpush1.xpose.msra.mxu0 0.0
    %278 = vmatprep.subr.mxu0 0.0
    %279 = vmatpush1.xpose.msra.mxu0 0.0
    %280 = vmatprep.subr.mxu0 0.0
    %281 = vmatpush1.xpose.msra.mxu0 0.0
    %282 = vmatprep.subr.mxu0 0.0
    %283 = vmatpush1.xpose.msra.mxu0 0.0
    %284 = vmatprep.subr.mxu0 0.0
    %285 = vmatpush1.xpose.msra.mxu0 0.0
    %286 = vmatprep.subr.mxu0 0.0
    %287 = vmatpush1.xpose.msra.mxu0 0.0
    %288 = vmatprep.subr.mxu0 0.0
    %289 = vmatpush1.xpose.msra.mxu0 0.0
    %290 = vmatprep.subr.mxu0 0.0
    %291 = vmatpush1.xpose.msra.mxu0 0.0
    %292 = vmatprep.subr.mxu0 0.0
    %293 = vmatpush1.xpose.msra.mxu0 %v262
    %294 = vmatprep.subr.mxu0 0.0
    %295 = vmatpush1.xpose.msra.mxu0 %v260
    %296 = vmatprep.subr.mxu0 0.0
    %297 = vmatpush2.xpose.msra.mxu0 0.0
    %298 = vmatprep.subr.mxu0 0.0
    %299 = vmatpush2.xpose.msra.mxu0 0.0
    %300 = vmatprep.subr.mxu0 0.0
    %301 = vmatpush2.xpose.msra.mxu0 0.0
    %302 = vmatprep.subr.mxu0 0.0
    %303 = vmatpush2.xpose.msra.mxu0 0.0
    %304 = vmatprep.subr.mxu0 0.0
    %305 = vmatpush2.xpose.msra.mxu0 0.0
    %306 = vmatprep.subr.mxu0 0.0
    %307 = vmatpush2.xpose.msra.mxu0 0.0
    %308 = vmatprep.subr.mxu0 0.0
    %309 = vmatpush2.xpose.msra.mxu0 0.0
    %310 = vmatprep.subr.mxu0 0.0
    %311 = vmatpush2.xpose.msra.mxu0 0.0
    %312 = vmatprep.subr.mxu0 0.0
    %313 = vmatpush2.xpose.msra.mxu0 0.0
    %314 = vmatprep.subr.mxu0 0.0
    %315 = vmatpush2.xpose.msra.mxu0 0.0
    %316 = vmatprep.subr.mxu0 0.0
    %317 = vmatpush2.xpose.msra.mxu0 0.0
    %318 = vmatprep.subr.mxu0 0.0
    %319 = vmatpush2.xpose.msra.mxu0 0.0
    %320 = vmatprep.subr.mxu0 0.0
    %321 = vmatpush2.xpose.msra.mxu0 0.0
    %322 = vmatprep.subr.mxu0 0.0
    %323 = vmatpush2.xpose.msra.mxu0 0.0
    %324 = vmatprep.subr.mxu0 0.0
    %325 = vmatpush2.xpose.msra.mxu0 0.0
    %326 = vmatprep.subr.mxu0 0.0
    %327 = vmatpush2.xpose.msra.mxu0 0.0
    %328 = vmatprep.mubr.f32.mxu0 0.0
    %329 = vmatmul.mubr.f32.gmra.mxu0 %v256
    %v330 = vpop.f32.mrf.mxu0
    %v331 = vadd.f32 0.0, %v330
    %v332 = vpop.f32.mrf.mxu0
    %333 = vmatprep.mubr.f32.mxu0 0.0
    %334 = vmatmul.mubr.f32.gmra.mxu0 %v258
    %v335 = vpop.f32.mrf.mxu0
    %v336 = vadd.f32 0.0, %v335
    %v337 = vpop.f32.mrf.mxu0
    %338 = vdwg.mxu0
    %v339 = vmul.f32 %v331, 0.35355338
    %v340 = vmul.f32 %v336, 0.35355338
    %v341 = vadd.f32 %v339, %v29
    %v342 = vadd.f32 %v340, %v30
    %v343 = vsel %vm215, %v341, -inf
    %344 = vmax.xlane.f32.xlu0 %v343
    %v345 = vpop.xlane.xlu0 %344
    %v346 = vsel %vm215, %v342, -inf
    %347 = vmax.xlane.f32.xlu0 %v346
    %v348 = vpop.xlane.xlu0 %347
    %v349 = vsub.f32 %v341, %v345
    %v350 = vsub.f32 %v342, %v348
    %v351 = vmul.f32 %v349, 1.442695
    %v352 = vpow.pop %v351
    %v353 = vmul.f32 %v350, 1.442695
    %v354 = vpow.pop %v353
    %v355 = vsel %vm215, %v352, 0.0
    %356 = vadd.xlane.f32.xlu0 %v355
    %v357 = vpop.xlane.xlu0 %356
    %v358 = vsel %vm215, %v354, 0.0
    %359 = vadd.xlane.f32.xlu0 %v358
    %v360 = vpop.xlane.xlu0 %359
    %v361 = vrcp.pop %v357
    %v362 = vrcp.pop %v360
    %v363 = vmul.f32 %v352, %v361
    %v364 = vmul.f32 %v354, %v362
    %v365 = vlaneseq
    %v366 = vshrl.u32 %v365, 7
    %v367 = vsub.s32 7, %v366
    %v368 = vrot.slane %v33, %v367
    %370 = vrot.lane.b32.xlu0 %v368, 64
    %v371 = vpop.permute.xlu0 %370
    %v373 = vmul.f32 %v113, %v371
    %v374 = vmul.f32 %v118, %v371
    %377 = vrot.lane.b32.xlu0 %v373, 64
    %v378 = vpop.permute.xlu0 %377
    %379 = vrot.lane.b32.xlu0 %v374, 64
    %v380 = vpop.permute.xlu0 %379
    %v384 = vsel %vm215, %v363, 0
    %v387 = vsel %vm215, %v364, 0
    %389 = vmatprep.subr.mxu0 0.0
    %390 = vmatpush1.msra.mxu0 0.0
    %391 = vmatprep.subr.mxu0 0.0
    %392 = vmatpush1.msra.mxu0 0.0
    %393 = vmatprep.subr.mxu0 0.0
    %394 = vmatpush1.msra.mxu0 0.0
    %395 = vmatprep.subr.mxu0 0.0
    %396 = vmatpush1.msra.mxu0 0.0
    %397 = vmatprep.subr.mxu0 0.0
    %398 = vmatpush1.msra.mxu0 0.0
    %399 = vmatprep.subr.mxu0 0.0
    %400 = vmatpush1.msra.mxu0 0.0
    %401 = vmatprep.subr.mxu0 0.0
    %402 = vmatpush1.msra.mxu0 0.0
    %403 = vmatprep.subr.mxu0 0.0
    %404 = vmatpush1.msra.mxu0 0.0
    %405 = vmatprep.subr.mxu0 0.0
    %406 = vmatpush1.msra.mxu0 0.0
    %407 = vmatprep.subr.mxu0 0.0
    %408 = vmatpush1.msra.mxu0 0.0
    %409 = vmatprep.subr.mxu0 0.0
    %410 = vmatpush1.msra.mxu0 0.0
    %411 = vmatprep.subr.mxu0 0.0
    %412 = vmatpush1.msra.mxu0 0.0
    %413 = vmatprep.subr.mxu0 0.0
    %414 = vmatpush1.msra.mxu0 0.0
    %415 = vmatprep.subr.mxu0 0.0
    %416 = vmatpush1.msra.mxu0 0.0
    %417 = vmatprep.subr.mxu0 0.0
    %418 = vmatpush1.msra.mxu0 %v380
    %419 = vmatprep.subr.mxu0 0.0
    %420 = vmatpush1.msra.mxu0 %v378
    %421 = vmatprep.subr.mxu0 0.0
    %422 = vmatpush2.msra.mxu0 0.0
    %423 = vmatprep.subr.mxu0 0.0
    %424 = vmatpush2.msra.mxu0 0.0
    %425 = vmatprep.subr.mxu0 0.0
    %426 = vmatpush2.msra.mxu0 0.0
    %427 = vmatprep.subr.mxu0 0.0
    %428 = vmatpush2.msra.mxu0 0.0
    %429 = vmatprep.subr.mxu0 0.0
    %430 = vmatpush2.msra.mxu0 0.0
    %431 = vmatprep.subr.mxu0 0.0
    %432 = vmatpush2.msra.mxu0 0.0
    %433 = vmatprep.subr.mxu0 0.0
    %434 = vmatpush2.msra.mxu0 0.0
    %435 = vmatprep.subr.mxu0 0.0
    %436 = vmatpush2.msra.mxu0 0.0
    %437 = vmatprep.subr.mxu0 0.0
    %438 = vmatpush2.msra.mxu0 0.0
    %439 = vmatprep.subr.mxu0 0.0
    %440 = vmatpush2.msra.mxu0 0.0
    %441 = vmatprep.subr.mxu0 0.0
    %442 = vmatpush2.msra.mxu0 0.0
    %443 = vmatprep.subr.mxu0 0.0
    %444 = vmatpush2.msra.mxu0 0.0
    %445 = vmatprep.subr.mxu0 0.0
    %446 = vmatpush2.msra.mxu0 0.0
    %447 = vmatprep.subr.mxu0 0.0
    %448 = vmatpush2.msra.mxu0 0.0
    %449 = vmatprep.subr.mxu0 0.0
    %450 = vmatpush2.msra.mxu0 0.0
    %451 = vmatprep.subr.mxu0 0.0
    %452 = vmatpush2.msra.mxu0 0.0
    %453 = vmatprep.mubr.f32.mxu0 0.0
    %454 = vmatmul.mubr.f32.gmra.mxu0 %v384
    %v455 = vpop.f32.mrf.mxu0
    %v456 = vadd.f32 0.0, %v455
    %v457 = vpop.f32.mrf.mxu0
    %458 = vmatprep.mubr.f32.mxu0 0.0
    %459 = vmatmul.mubr.f32.gmra.mxu0 %v387
    %v460 = vpop.f32.mrf.mxu0
    %v461 = vadd.f32 0.0, %v460
    %v462 = vpop.f32.mrf.mxu0
    %463 = vdwg.mxu0
    %466 = vrot.lane.b32.xlu0 %v246, 64
    %v467 = vpop.permute.xlu0 %466
    %468 = vrot.lane.b32.xlu0 %v247, 64
    %v469 = vpop.permute.xlu0 %468
    %v473 = vsel %vm215, %v236, 0
    %v476 = vsel %vm215, %v237, 0
    %478 = vmatprep.subr.mxu0 0.0
    %479 = vmatpush1.msra.mxu0 0.0
    %480 = vmatprep.subr.mxu0 0.0
    %481 = vmatpush1.msra.mxu0 0.0
    %482 = vmatprep.subr.mxu0 0.0
    %483 = vmatpush1.msra.mxu0 0.0
    %484 = vmatprep.subr.mxu0 0.0
    %485 = vmatpush1.msra.mxu0 0.0
    %486 = vmatprep.subr.mxu0 0.0
    %487 = vmatpush1.msra.mxu0 0.0
    %488 = vmatprep.subr.mxu0 0.0
    %489 = vmatpush1.msra.mxu0 0.0
    %490 = vmatprep.subr.mxu0 0.0
    %491 = vmatpush1.msra.mxu0 0.0
    %492 = vmatprep.subr.mxu0 0.0
    %493 = vmatpush1.msra.mxu0 0.0
    %494 = vmatprep.subr.mxu0 0.0
    %495 = vmatpush1.msra.mxu0 0.0
    %496 = vmatprep.subr.mxu0 0.0
    %497 = vmatpush1.msra.mxu0 0.0
    %498 = vmatprep.subr.mxu0 0.0
    %499 = vmatpush1.msra.mxu0 0.0
    %500 = vmatprep.subr.mxu0 0.0
    %501 = vmatpush1.msra.mxu0 0.0
    %502 = vmatprep.subr.mxu0 0.0
    %503 = vmatpush1.msra.mxu0 0.0
    %504 = vmatprep.subr.mxu0 0.0
    %505 = vmatpush1.msra.mxu0 0.0
    %506 = vmatprep.subr.mxu0 0.0
    %507 = vmatpush1.msra.mxu0 %v469
    %508 = vmatprep.subr.mxu0 0.0
    %509 = vmatpush1.msra.mxu0 %v467
    %510 = vmatprep.subr.mxu0 0.0
    %511 = vmatpush2.msra.mxu0 0.0
    %512 = vmatprep.subr.mxu0 0.0
    %513 = vmatpush2.msra.mxu0 0.0
    %514 = vmatprep.subr.mxu0 0.0
    %515 = vmatpush2.msra.mxu0 0.0
    %516 = vmatprep.subr.mxu0 0.0
    %517 = vmatpush2.msra.mxu0 0.0
    %518 = vmatprep.subr.mxu0 0.0
    %519 = vmatpush2.msra.mxu0 0.0
    %520 = vmatprep.subr.mxu0 0.0
    %521 = vmatpush2.msra.mxu0 0.0
    %522 = vmatprep.subr.mxu0 0.0
    %523 = vmatpush2.msra.mxu0 0.0
    %524 = vmatprep.subr.mxu0 0.0
    %525 = vmatpush2.msra.mxu0 0.0
    %526 = vmatprep.subr.mxu0 0.0
    %527 = vmatpush2.msra.mxu0 0.0
    %528 = vmatprep.subr.mxu0 0.0
    %529 = vmatpush2.msra.mxu0 0.0
    %530 = vmatprep.subr.mxu0 0.0
    %531 = vmatpush2.msra.mxu0 0.0
    %532 = vmatprep.subr.mxu0 0.0
    %533 = vmatpush2.msra.mxu0 0.0
    %534 = vmatprep.subr.mxu0 0.0
    %535 = vmatpush2.msra.mxu0 0.0
    %536 = vmatprep.subr.mxu0 0.0
    %537 = vmatpush2.msra.mxu0 0.0
    %538 = vmatprep.subr.mxu0 0.0
    %539 = vmatpush2.msra.mxu0 0.0
    %540 = vmatprep.subr.mxu0 0.0
    %541 = vmatpush2.msra.mxu0 0.0
    %542 = vmatprep.mubr.f32.mxu0 0.0
    %543 = vmatmul.mubr.f32.gmra.mxu0 %v473
    %v544 = vpop.f32.mrf.mxu0
    %v545 = vadd.f32 %v456, %v544
    %v546 = vpop.f32.mrf.mxu0
    %547 = vmatprep.mubr.f32.mxu0 0.0
    %548 = vmatmul.mubr.f32.gmra.mxu0 %v476
    %v549 = vpop.f32.mrf.mxu0
    %v550 = vadd.f32 %v461, %v549
    %v551 = vpop.f32.mrf.mxu0
    %552 = vdwg.mxu0
    %553 = vrot.lane.b32.xlu0 %v113, 112
    %v554 = vpop.permute.xlu0 %553
    %555 = vrot.lane.b32.xlu0 %v118, 112
    %v556 = vpop.permute.xlu0 %555
    %557 = vrot.lane.b32.xlu0 %v113, 80
    %v558 = vpop.permute.xlu0 %557
    %559 = vrot.lane.b32.xlu0 %v118, 80
    %v560 = vpop.permute.xlu0 %559
    %v561 = vsel %vm127, %v554, 0
    %v563 = vsel %vm127, %v556, 0
    %v565 = vsel %vm127, %v558, 0
    %v567 = vsel %vm127, %v560, 0
    %569 = vmatprep.subr.mxu0 0.0
    %570 = vmatpush1.xpose.msra.mxu0 0.0
    %571 = vmatprep.subr.mxu0 0.0
    %572 = vmatpush1.xpose.msra.mxu0 0.0
    %573 = vmatprep.subr.mxu0 0.0
    %574 = vmatpush1.xpose.msra.mxu0 0.0
    %575 = vmatprep.subr.mxu0 0.0
    %576 = vmatpush1.xpose.msra.mxu0 0.0
    %577 = vmatprep.subr.mxu0 0.0
    %578 = vmatpush1.xpose.msra.mxu0 0.0
    %579 = vmatprep.subr.mxu0 0.0
    %580 = vmatpush1.xpose.msra.mxu0 0.0
    %581 = vmatprep.subr.mxu0 0.0
    %582 = vmatpush1.xpose.msra.mxu0 0.0
    %583 = vmatprep.subr.mxu0 0.0
    %584 = vmatpush1.xpose.msra.mxu0 0.0
    %585 = vmatprep.subr.mxu0 0.0
    %586 = vmatpush1.xpose.msra.mxu0 0.0
    %587 = vmatprep.subr.mxu0 0.0
    %588 = vmatpush1.xpose.msra.mxu0 0.0
    %589 = vmatprep.subr.mxu0 0.0
    %590 = vmatpush1.xpose.msra.mxu0 0.0
    %591 = vmatprep.subr.mxu0 0.0
    %592 = vmatpush1.xpose.msra.mxu0 0.0
    %593 = vmatprep.subr.mxu0 0.0
    %594 = vmatpush1.xpose.msra.mxu0 0.0
    %595 = vmatprep.subr.mxu0 0.0
    %596 = vmatpush1.xpose.msra.mxu0 0.0
    %597 = vmatprep.subr.mxu0 0.0
    %598 = vmatpush1.xpose.msra.mxu0 %v567
    %599 = vmatprep.subr.mxu0 0.0
    %600 = vmatpush1.xpose.msra.mxu0 %v565
    %601 = vmatprep.subr.mxu0 0.0
    %602 = vmatpush2.xpose.msra.mxu0 0.0
    %603 = vmatprep.subr.mxu0 0.0
    %604 = vmatpush2.xpose.msra.mxu0 0.0
    %605 = vmatprep.subr.mxu0 0.0
    %606 = vmatpush2.xpose.msra.mxu0 0.0
    %607 = vmatprep.subr.mxu0 0.0
    %608 = vmatpush2.xpose.msra.mxu0 0.0
    %609 = vmatprep.subr.mxu0 0.0
    %610 = vmatpush2.xpose.msra.mxu0 0.0
    %611 = vmatprep.subr.mxu0 0.0
    %612 = vmatpush2.xpose.msra.mxu0 0.0
    %613 = vmatprep.subr.mxu0 0.0
    %614 = vmatpush2.xpose.msra.mxu0 0.0
    %615 = vmatprep.subr.mxu0 0.0
    %616 = vmatpush2.xpose.msra.mxu0 0.0
    %617 = vmatprep.subr.mxu0 0.0
    %618 = vmatpush2.xpose.msra.mxu0 0.0
    %619 = vmatprep.subr.mxu0 0.0
    %620 = vmatpush2.xpose.msra.mxu0 0.0
    %621 = vmatprep.subr.mxu0 0.0
    %622 = vmatpush2.xpose.msra.mxu0 0.0
    %623 = vmatprep.subr.mxu0 0.0
    %624 = vmatpush2.xpose.msra.mxu0 0.0
    %625 = vmatprep.subr.mxu0 0.0
    %626 = vmatpush2.xpose.msra.mxu0 0.0
    %627 = vmatprep.subr.mxu0 0.0
    %628 = vmatpush2.xpose.msra.mxu0 0.0
    %629 = vmatprep.subr.mxu0 0.0
    %630 = vmatpush2.xpose.msra.mxu0 0.0
    %631 = vmatprep.subr.mxu0 0.0
    %632 = vmatpush2.xpose.msra.mxu0 0.0
    %633 = vmatprep.mubr.f32.mxu0 0.0
    %634 = vmatmul.mubr.f32.gmra.mxu0 %v561
    %v635 = vpop.f32.mrf.mxu0
    %v636 = vadd.f32 0.0, %v635
    %v637 = vpop.f32.mrf.mxu0
    %638 = vmatprep.mubr.f32.mxu0 0.0
    %639 = vmatmul.mubr.f32.gmra.mxu0 %v563
    %v640 = vpop.f32.mrf.mxu0
    %v641 = vadd.f32 0.0, %v640
    %v642 = vpop.f32.mrf.mxu0
    %643 = vdwg.mxu0
    %v644 = vmul.f32 %v636, 0.35355338
    %v645 = vmul.f32 %v641, 0.35355338
    %v646 = vadd.f32 %v644, %v29
    %v647 = vadd.f32 %v645, %v30
    %v648 = vsel %vm215, %v646, -inf
    %649 = vmax.xlane.f32.xlu0 %v648
    %v650 = vpop.xlane.xlu0 %649
    %v651 = vsel %vm215, %v647, -inf
    %652 = vmax.xlane.f32.xlu0 %v651
    %v653 = vpop.xlane.xlu0 %652
    %v654 = vsub.f32 %v646, %v650
    %v655 = vsub.f32 %v647, %v653
    %v656 = vmul.f32 %v654, 1.442695
    %v657 = vpow.pop %v656
    %v658 = vmul.f32 %v655, 1.442695
    %v659 = vpow.pop %v658
    %v660 = vsel %vm215, %v657, 0.0
    %661 = vadd.xlane.f32.xlu0 %v660
    %v662 = vpop.xlane.xlu0 %661
    %v663 = vsel %vm215, %v659, 0.0
    %664 = vadd.xlane.f32.xlu0 %v663
    %v665 = vpop.xlane.xlu0 %664
    %v666 = vrcp.pop %v662
    %v667 = vrcp.pop %v665
    %v668 = vmul.f32 %v657, %v666
    %v669 = vmul.f32 %v659, %v667
    %v670 = vlaneseq
    %v671 = vshrl.u32 %v670, 7
    %v672 = vsub.s32 0, %v671
    %v673 = vrot.slane %v34, %v672
    %675 = vrot.lane.b32.xlu0 %v673, 64
    %v676 = vpop.permute.xlu0 %675
    %v678 = vmul.f32 %v113, %v676
    %v679 = vmul.f32 %v118, %v676
    %682 = vrot.lane.b32.xlu0 %v678, 64
    %v683 = vpop.permute.xlu0 %682
    %684 = vrot.lane.b32.xlu0 %v679, 64
    %v685 = vpop.permute.xlu0 %684
    %v689 = vsel %vm215, %v668, 0
    %v692 = vsel %vm215, %v669, 0
    %694 = vmatprep.subr.mxu0 0.0
    %695 = vmatpush1.msra.mxu0 0.0
    %696 = vmatprep.subr.mxu0 0.0
    %697 = vmatpush1.msra.mxu0 0.0
    %698 = vmatprep.subr.mxu0 0.0
    %699 = vmatpush1.msra.mxu0 0.0
    %700 = vmatprep.subr.mxu0 0.0
    %701 = vmatpush1.msra.mxu0 0.0
    %702 = vmatprep.subr.mxu0 0.0
    %703 = vmatpush1.msra.mxu0 0.0
    %704 = vmatprep.subr.mxu0 0.0
    %705 = vmatpush1.msra.mxu0 0.0
    %706 = vmatprep.subr.mxu0 0.0
    %707 = vmatpush1.msra.mxu0 0.0
    %708 = vmatprep.subr.mxu0 0.0
    %709 = vmatpush1.msra.mxu0 0.0
    %710 = vmatprep.subr.mxu0 0.0
    %711 = vmatpush1.msra.mxu0 0.0
    %712 = vmatprep.subr.mxu0 0.0
    %713 = vmatpush1.msra.mxu0 0.0
    %714 = vmatprep.subr.mxu0 0.0
    %715 = vmatpush1.msra.mxu0 0.0
    %716 = vmatprep.subr.mxu0 0.0
    %717 = vmatpush1.msra.mxu0 0.0
    %718 = vmatprep.subr.mxu0 0.0
    %719 = vmatpush1.msra.mxu0 0.0
    %720 = vmatprep.subr.mxu0 0.0
    %721 = vmatpush1.msra.mxu0 0.0
    %722 = vmatprep.subr.mxu0 0.0
    %723 = vmatpush1.msra.mxu0 %v685
    %724 = vmatprep.subr.mxu0 0.0
    %725 = vmatpush1.msra.mxu0 %v683
    %726 = vmatprep.subr.mxu0 0.0
    %727 = vmatpush2.msra.mxu0 0.0
    %728 = vmatprep.subr.mxu0 0.0
    %729 = vmatpush2.msra.mxu0 0.0
    %730 = vmatprep.subr.mxu0 0.0
    %731 = vmatpush2.msra.mxu0 0.0
    %732 = vmatprep.subr.mxu0 0.0
    %733 = vmatpush2.msra.mxu0 0.0
    %734 = vmatprep.subr.mxu0 0.0
    %735 = vmatpush2.msra.mxu0 0.0
    %736 = vmatprep.subr.mxu0 0.0
    %737 = vmatpush2.msra.mxu0 0.0
    %738 = vmatprep.subr.mxu0 0.0
    %739 = vmatpush2.msra.mxu0 0.0
    %740 = vmatprep.subr.mxu0 0.0
    %741 = vmatpush2.msra.mxu0 0.0
    %742 = vmatprep.subr.mxu0 0.0
    %743 = vmatpush2.msra.mxu0 0.0
    %744 = vmatprep.subr.mxu0 0.0
    %745 = vmatpush2.msra.mxu0 0.0
    %746 = vmatprep.subr.mxu0 0.0
    %747 = vmatpush2.msra.mxu0 0.0
    %748 = vmatprep.subr.mxu0 0.0
    %749 = vmatpush2.msra.mxu0 0.0
    %750 = vmatprep.subr.mxu0 0.0
    %751 = vmatpush2.msra.mxu0 0.0
    %752 = vmatprep.subr.mxu0 0.0
    %753 = vmatpush2.msra.mxu0 0.0
    %754 = vmatprep.subr.mxu0 0.0
    %755 = vmatpush2.msra.mxu0 0.0
    %756 = vmatprep.subr.mxu0 0.0
    %757 = vmatpush2.msra.mxu0 0.0
    %758 = vmatprep.mubr.f32.mxu0 0.0
    %759 = vmatmul.mubr.f32.gmra.mxu0 %v689
    %v760 = vpop.f32.mrf.mxu0
    %v761 = vadd.f32 0.0, %v760
    %v762 = vpop.f32.mrf.mxu0
    %763 = vmatprep.mubr.f32.mxu0 0.0
    %764 = vmatmul.mubr.f32.gmra.mxu0 %v692
    %v765 = vpop.f32.mrf.mxu0
    %v766 = vadd.f32 0.0, %v765
    %v767 = vpop.f32.mrf.mxu0
    %768 = vdwg.mxu0
    %v769 = vadd.f32 %v545, %v761
    %v770 = vadd.f32 %v550, %v766
    %771 = vrot.lane.b32.xlu0 %v113, 104
    %v772 = vpop.permute.xlu0 %771
    %773 = vrot.lane.b32.xlu0 %v118, 104
    %v774 = vpop.permute.xlu0 %773
    %775 = vrot.lane.b32.xlu0 %v113, 72
    %v776 = vpop.permute.xlu0 %775
    %777 = vrot.lane.b32.xlu0 %v118, 72
    %v778 = vpop.permute.xlu0 %777
    %v779 = vsel %vm127, %v772, 0
    %v781 = vsel %vm127, %v774, 0
    %v783 = vsel %vm127, %v776, 0
    %v785 = vsel %vm127, %v778, 0
    %787 = vmatprep.subr.mxu0 0.0
    %788 = vmatpush1.xpose.msra.mxu0 0.0
    %789 = vmatprep.subr.mxu0 0.0
    %790 = vmatpush1.xpose.msra.mxu0 0.0
    %791 = vmatprep.subr.mxu0 0.0
    %792 = vmatpush1.xpose.msra.mxu0 0.0
    %793 = vmatprep.subr.mxu0 0.0
    %794 = vmatpush1.xpose.msra.mxu0 0.0
    %795 = vmatprep.subr.mxu0 0.0
    %796 = vmatpush1.xpose.msra.mxu0 0.0
    %797 = vmatprep.subr.mxu0 0.0
    %798 = vmatpush1.xpose.msra.mxu0 0.0
    %799 = vmatprep.subr.mxu0 0.0
    %800 = vmatpush1.xpose.msra.mxu0 0.0
    %801 = vmatprep.subr.mxu0 0.0
    %802 = vmatpush1.xpose.msra.mxu0 0.0
    %803 = vmatprep.subr.mxu0 0.0
    %804 = vmatpush1.xpose.msra.mxu0 0.0
    %805 = vmatprep.subr.mxu0 0.0
    %806 = vmatpush1.xpose.msra.mxu0 0.0
    %807 = vmatprep.subr.mxu0 0.0
    %808 = vmatpush1.xpose.msra.mxu0 0.0
    %809 = vmatprep.subr.mxu0 0.0
    %810 = vmatpush1.xpose.msra.mxu0 0.0
    %811 = vmatprep.subr.mxu0 0.0
    %812 = vmatpush1.xpose.msra.mxu0 0.0
    %813 = vmatprep.subr.mxu0 0.0
    %814 = vmatpush1.xpose.msra.mxu0 0.0
    %815 = vmatprep.subr.mxu0 0.0
    %816 = vmatpush1.xpose.msra.mxu0 %v785
    %817 = vmatprep.subr.mxu0 0.0
    %818 = vmatpush1.xpose.msra.mxu0 %v783
    %819 = vmatprep.subr.mxu0 0.0
    %820 = vmatpush2.xpose.msra.mxu0 0.0
    %821 = vmatprep.subr.mxu0 0.0
    %822 = vmatpush2.xpose.msra.mxu0 0.0
    %823 = vmatprep.subr.mxu0 0.0
    %824 = vmatpush2.xpose.msra.mxu0 0.0
    %825 = vmatprep.subr.mxu0 0.0
    %826 = vmatpush2.xpose.msra.mxu0 0.0
    %827 = vmatprep.subr.mxu0 0.0
    %828 = vmatpush2.xpose.msra.mxu0 0.0
    %829 = vmatprep.subr.mxu0 0.0
    %830 = vmatpush2.xpose.msra.mxu0 0.0
    %831 = vmatprep.subr.mxu0 0.0
    %832 = vmatpush2.xpose.msra.mxu0 0.0
    %833 = vmatprep.subr.mxu0 0.0
    %834 = vmatpush2.xpose.msra.mxu0 0.0
    %835 = vmatprep.subr.mxu0 0.0
    %836 = vmatpush2.xpose.msra.mxu0 0.0
    %837 = vmatprep.subr.mxu0 0.0
    %838 = vmatpush2.xpose.msra.mxu0 0.0
    %839 = vmatprep.subr.mxu0 0.0
    %840 = vmatpush2.xpose.msra.mxu0 0.0
    %841 = vmatprep.subr.mxu0 0.0
    %842 = vmatpush2.xpose.msra.mxu0 0.0
    %843 = vmatprep.subr.mxu0 0.0
    %844 = vmatpush2.xpose.msra.mxu0 0.0
    %845 = vmatprep.subr.mxu0 0.0
    %846 = vmatpush2.xpose.msra.mxu0 0.0
    %847 = vmatprep.subr.mxu0 0.0
    %848 = vmatpush2.xpose.msra.mxu0 0.0
    %849 = vmatprep.subr.mxu0 0.0
    %850 = vmatpush2.xpose.msra.mxu0 0.0
    %851 = vmatprep.mubr.f32.mxu0 0.0
    %852 = vmatmul.mubr.f32.gmra.mxu0 %v779
    %v853 = vpop.f32.mrf.mxu0
    %v854 = vadd.f32 0.0, %v853
    %v855 = vpop.f32.mrf.mxu0
    %856 = vmatprep.mubr.f32.mxu0 0.0
    %857 = vmatmul.mubr.f32.gmra.mxu0 %v781
    %v858 = vpop.f32.mrf.mxu0
    %v859 = vadd.f32 0.0, %v858
    %v860 = vpop.f32.mrf.mxu0
    %861 = vdwg.mxu0
    %v862 = vmul.f32 %v854, 0.35355338
    %v863 = vmul.f32 %v859, 0.35355338
    %v864 = vadd.f32 %v862, %v29
    %v865 = vadd.f32 %v863, %v30
    %v866 = vsel %vm215, %v864, -inf
    %867 = vmax.xlane.f32.xlu0 %v866
    %v868 = vpop.xlane.xlu0 %867
    %v869 = vsel %vm215, %v865, -inf
    %870 = vmax.xlane.f32.xlu0 %v869
    %v871 = vpop.xlane.xlu0 %870
    %v872 = vsub.f32 %v864, %v868
    %v873 = vsub.f32 %v865, %v871
    %v874 = vmul.f32 %v872, 1.442695
    %v875 = vpow.pop %v874
    %v876 = vmul.f32 %v873, 1.442695
    %v877 = vpow.pop %v876
    %v878 = vsel %vm215, %v875, 0.0
    %879 = vadd.xlane.f32.xlu0 %v878
    %v880 = vpop.xlane.xlu0 %879
    %v881 = vsel %vm215, %v877, 0.0
    %882 = vadd.xlane.f32.xlu0 %v881
    %v883 = vpop.xlane.xlu0 %882
    %v884 = vrcp.pop %v880
    %v885 = vrcp.pop %v883
    %v886 = vmul.f32 %v875, %v884
    %v887 = vmul.f32 %v877, %v885
    %v888 = vlaneseq
    %v889 = vshrl.u32 %v888, 7
    %v890 = vsub.s32 1, %v889
    %v891 = vrot.slane %v34, %v890
    %893 = vrot.lane.b32.xlu0 %v891, 64
    %v894 = vpop.permute.xlu0 %893
    %v896 = vmul.f32 %v113, %v894
    %v897 = vmul.f32 %v118, %v894
    %900 = vrot.lane.b32.xlu0 %v896, 64
    %v901 = vpop.permute.xlu0 %900
    %902 = vrot.lane.b32.xlu0 %v897, 64
    %v903 = vpop.permute.xlu0 %902
    %v907 = vsel %vm215, %v886, 0
    %v910 = vsel %vm215, %v887, 0
    %912 = vmatprep.subr.mxu0 0.0
    %913 = vmatpush1.msra.mxu0 0.0
    %914 = vmatprep.subr.mxu0 0.0
    %915 = vmatpush1.msra.mxu0 0.0
    %916 = vmatprep.subr.mxu0 0.0
    %917 = vmatpush1.msra.mxu0 0.0
    %918 = vmatprep.subr.mxu0 0.0
    %919 = vmatpush1.msra.mxu0 0.0
    %920 = vmatprep.subr.mxu0 0.0
    %921 = vmatpush1.msra.mxu0 0.0
    %922 = vmatprep.subr.mxu0 0.0
    %923 = vmatpush1.msra.mxu0 0.0
    %924 = vmatprep.subr.mxu0 0.0
    %925 = vmatpush1.msra.mxu0 0.0
    %926 = vmatprep.subr.mxu0 0.0
    %927 = vmatpush1.msra.mxu0 0.0
    %928 = vmatprep.subr.mxu0 0.0
    %929 = vmatpush1.msra.mxu0 0.0
    %930 = vmatprep.subr.mxu0 0.0
    %931 = vmatpush1.msra.mxu0 0.0
    %932 = vmatprep.subr.mxu0 0.0
    %933 = vmatpush1.msra.mxu0 0.0
    %934 = vmatprep.subr.mxu0 0.0
    %935 = vmatpush1.msra.mxu0 0.0
    %936 = vmatprep.subr.mxu0 0.0
    %937 = vmatpush1.msra.mxu0 0.0
    %938 = vmatprep.subr.mxu0 0.0
    %939 = vmatpush1.msra.mxu0 0.0
    %940 = vmatprep.subr.mxu0 0.0
    %941 = vmatpush1.msra.mxu0 %v903
    %942 = vmatprep.subr.mxu0 0.0
    %943 = vmatpush1.msra.mxu0 %v901
    %944 = vmatprep.subr.mxu0 0.0
    %945 = vmatpush2.msra.mxu0 0.0
    %946 = vmatprep.subr.mxu0 0.0
    %947 = vmatpush2.msra.mxu0 0.0
    %948 = vmatprep.subr.mxu0 0.0
    %949 = vmatpush2.msra.mxu0 0.0
    %950 = vmatprep.subr.mxu0 0.0
    %951 = vmatpush2.msra.mxu0 0.0
    %952 = vmatprep.subr.mxu0 0.0
    %953 = vmatpush2.msra.mxu0 0.0
    %954 = vmatprep.subr.mxu0 0.0
    %955 = vmatpush2.msra.mxu0 0.0
    %956 = vmatprep.subr.mxu0 0.0
    %957 = vmatpush2.msra.mxu0 0.0
    %958 = vmatprep.subr.mxu0 0.0
    %959 = vmatpush2.msra.mxu0 0.0
    %960 = vmatprep.subr.mxu0 0.0
    %961 = vmatpush2.msra.mxu0 0.0
    %962 = vmatprep.subr.mxu0 0.0
    %963 = vmatpush2.msra.mxu0 0.0
    %964 = vmatprep.subr.mxu0 0.0
    %965 = vmatpush2.msra.mxu0 0.0
    %966 = vmatprep.subr.mxu0 0.0
    %967 = vmatpush2.msra.mxu0 0.0
    %968 = vmatprep.subr.mxu0 0.0
    %969 = vmatpush2.msra.mxu0 0.0
    %970 = vmatprep.subr.mxu0 0.0
    %971 = vmatpush2.msra.mxu0 0.0
    %972 = vmatprep.subr.mxu0 0.0
    %973 = vmatpush2.msra.mxu0 0.0
    %974 = vmatprep.subr.mxu0 0.0
    %975 = vmatpush2.msra.mxu0 0.0
    %976 = vmatprep.mubr.f32.mxu0 0.0
    %977 = vmatmul.mubr.f32.gmra.mxu0 %v907
    %v978 = vpop.f32.mrf.mxu0
    %v979 = vadd.f32 0.0, %v978
    %v980 = vpop.f32.mrf.mxu0
    %981 = vmatprep.mubr.f32.mxu0 0.0
    %982 = vmatmul.mubr.f32.gmra.mxu0 %v910
    %v983 = vpop.f32.mrf.mxu0
    %v984 = vadd.f32 0.0, %v983
    %v985 = vpop.f32.mrf.mxu0
    %986 = vdwg.mxu0
    %v987 = vadd.f32 %v769, %v979
    %v988 = vadd.f32 %v770, %v984
    %993 = vrot.lane.b32.xlu0 %v35, 32
    %v994 = vpop.permute.xlu0 %993
    %995 = vrot.lane.b32.xlu0 %v36, 32
    %v996 = vpop.permute.xlu0 %995
    %997 = vrot.lane.b32.xlu0 %v37, 32
    %v998 = vpop.permute.xlu0 %997
    %999 = vrot.lane.b32.xlu0 %v38, 32
    %v1000 = vpop.permute.xlu0 %999
    %v1006 = vsel %vm39, %v987, 0
    %v1009 = vsel %vm39, %v988, 0
    %1011 = vmatprep.subr.mxu0 0.0
    %1012 = vmatpush1.msra.mxu0 0.0
    %1013 = vmatprep.subr.mxu0 0.0
    %1014 = vmatpush1.msra.mxu0 0.0
    %1015 = vmatprep.subr.mxu0 0.0
    %1016 = vmatpush1.msra.mxu0 0.0
    %1017 = vmatprep.subr.mxu0 0.0
    %1018 = vmatpush1.msra.mxu0 0.0
    %1019 = vmatprep.subr.mxu0 0.0
    %1020 = vmatpush1.msra.mxu0 0.0
    %1021 = vmatprep.subr.mxu0 0.0
    %1022 = vmatpush1.msra.mxu0 0.0
    %1023 = vmatprep.subr.mxu0 0.0
    %1024 = vmatpush1.msra.mxu0 0.0
    %1025 = vmatprep.subr.mxu0 0.0
    %1026 = vmatpush1.msra.mxu0 0.0
    %1027 = vmatprep.subr.mxu0 0.0
    %1028 = vmatpush1.msra.mxu0 0.0
    %1029 = vmatprep.subr.mxu0 0.0
    %1030 = vmatpush1.msra.mxu0 0.0
    %1031 = vmatprep.subr.mxu0 0.0
    %1032 = vmatpush1.msra.mxu0 0.0
    %1033 = vmatprep.subr.mxu0 0.0
    %1034 = vmatpush1.msra.mxu0 0.0
    %1035 = vmatprep.subr.mxu0 0.0
    %1036 = vmatpush1.msra.mxu0 %v1000
    %1037 = vmatprep.subr.mxu0 0.0
    %1038 = vmatpush1.msra.mxu0 %v998
    %1039 = vmatprep.subr.mxu0 0.0
    %1040 = vmatpush1.msra.mxu0 %v996
    %1041 = vmatprep.subr.mxu0 0.0
    %1042 = vmatpush1.msra.mxu0 %v994
    %1043 = vmatprep.subr.mxu0 0.0
    %1044 = vmatpush2.msra.mxu0 0.0
    %1045 = vmatprep.subr.mxu0 0.0
    %1046 = vmatpush2.msra.mxu0 0.0
    %1047 = vmatprep.subr.mxu0 0.0
    %1048 = vmatpush2.msra.mxu0 0.0
    %1049 = vmatprep.subr.mxu0 0.0
    %1050 = vmatpush2.msra.mxu0 0.0
    %1051 = vmatprep.subr.mxu0 0.0
    %1052 = vmatpush2.msra.mxu0 0.0
    %1053 = vmatprep.subr.mxu0 0.0
    %1054 = vmatpush2.msra.mxu0 0.0
    %1055 = vmatprep.subr.mxu0 0.0
    %1056 = vmatpush2.msra.mxu0 0.0
    %1057 = vmatprep.subr.mxu0 0.0
    %1058 = vmatpush2.msra.mxu0 0.0
    %1059 = vmatprep.subr.mxu0 0.0
    %1060 = vmatpush2.msra.mxu0 0.0
    %1061 = vmatprep.subr.mxu0 0.0
    %1062 = vmatpush2.msra.mxu0 0.0
    %1063 = vmatprep.subr.mxu0 0.0
    %1064 = vmatpush2.msra.mxu0 0.0
    %1065 = vmatprep.subr.mxu0 0.0
    %1066 = vmatpush2.msra.mxu0 0.0
    %1067 = vmatprep.subr.mxu0 0.0
    %1068 = vmatpush2.msra.mxu0 0.0
    %1069 = vmatprep.subr.mxu0 0.0
    %1070 = vmatpush2.msra.mxu0 0.0
    %1071 = vmatprep.subr.mxu0 0.0
    %1072 = vmatpush2.msra.mxu0 0.0
    %1073 = vmatprep.subr.mxu0 0.0
    %1074 = vmatpush2.msra.mxu0 0.0
    %1075 = vmatprep.mubr.f32.mxu0 0.0
    %1076 = vmatmul.mubr.f32.gmra.mxu0 %v1006
    %v1077 = vpop.f32.mrf.mxu0
    %v1078 = vadd.f32 0.0, %v1077
    %v1079 = vpop.f32.mrf.mxu0
    %1080 = vmatprep.mubr.f32.mxu0 0.0
    %1081 = vmatmul.mubr.f32.gmra.mxu0 %v1009
    %v1082 = vpop.f32.mrf.mxu0
    %v1083 = vadd.f32 0.0, %v1082
    %v1084 = vpop.f32.mrf.mxu0
    %1085 = vdwg.mxu0
    %1087 = vset.pattern.permute.xlu0 0
    %1088 = vperm.xlu0 %1087, %v31
    %v1089 = vpop.permute.xlu0 %1088
    %1092 = vset.pattern.permute.xlu0 0
    %1093 = vperm.xlu0 %1092, %v32
    %v1094 = vpop.permute.xlu0 %1093
    %v1096 = vmul.f32 %v1078, %v1089
    %v1097 = vmul.f32 %v1083, %v1094
    %v1098 = vadd.f32 %v1096, %v27
    %v1099 = vadd.f32 %v1097, %v28
    %v1100 = vsel %vm39, %v1098, 0.0
    %1101 = vadd.xlane.f32.xlu0 %v1100
    %v1102 = vpop.xlane.xlu0 %1101
    %v1103 = vsel %vm39, %v1099, 0.0
    %1104 = vadd.xlane.f32.xlu0 %v1103
    %v1105 = vpop.xlane.xlu0 %1104
    %v1106 = vrcp.pop 32.0
    %v1107 = vmul.f32 %v1102, %v1106
    %v1108 = vmul.f32 %v1105, %v1106
    %v1109 = vsub.f32 %v1098, %v1107
    %v1110 = vsub.f32 %v1099, %v1108
    %v1111 = vmul.f32 %v1109, %v1109
    %v1112 = vmul.f32 %v1110, %v1110
    %v1113 = vsel %vm39, %v1111, 0.0
    %1114 = vadd.xlane.f32.xlu0 %v1113
    %v1115 = vpop.xlane.xlu0 %1114
    %v1116 = vsel %vm39, %v1112, 0.0
    %1117 = vadd.xlane.f32.xlu0 %v1116
    %v1118 = vpop.xlane.xlu0 %1117
    %v1119 = vmul.f32 %v1115, %v1106
    %v1120 = vmul.f32 %v1118, %v1106
    %v1121 = vadd.f32 %v1119, 1e-05
    %v1122 = vadd.f32 %v1120, 1e-05
    %v1123 = vrsqrt.pop %v1121
    %v1124 = vrsqrt.pop %v1122
    %v1125 = vmul.f32 %v1109, %v1123
    %v1126 = vmul.f32 %v1110, %v1124
    %v1127 = vlaneseq
    %v1128 = vshrl.u32 %v1127, 7
    %v1129 = vsub.s32 2, %v1128
    %v1130 = vrot.slane %v33, %v1129
    %v1131 = vmul.f32 %v1125, %v1130
    %v1132 = vmul.f32 %v1126, %v1130
    %v1133 = vlaneseq
    %v1134 = vshrl.u32 %v1133, 7
    %v1135 = vsub.s32 3, %v1134
    %v1136 = vrot.slane %v33, %v1135
    %v1137 = vadd.f32 %v1131, %v1136
    %v1138 = vadd.f32 %v1132, %v1136
    %v1139 = vld [vmem:[%s4] sm:$0xff]
    %v1140 = vld [vmem:[%s4 + $0x8] sm:$0xff]
    %v1141 = vld [vmem:[%s4 + $0x10] sm:$0xff]
    %v1142 = vld [vmem:[%s4 + $0x18] sm:$0xff]
    %v1143 = vlaneseq
    %v1144 = vshrl.u32 %v1143, 7
    %v1145 = vsub.s32 0, %v1144
    %v1146 = vrot.slane %v33, %v1145
    %v1148 = vsel %vm39, %v1137, 0
    %v1151 = vsel %vm39, %v1138, 0
    %1153 = vmatprep.subr.mxu0 0.0
    %1154 = vmatpush1.msra.mxu0 0.0
    %1155 = vmatprep.subr.mxu0 0.0
    %1156 = vmatpush1.msra.mxu0 0.0
    %1157 = vmatprep.subr.mxu0 0.0
    %1158 = vmatpush1.msra.mxu0 0.0
    %1159 = vmatprep.subr.mxu0 0.0
    %1160 = vmatpush1.msra.mxu0 0.0
    %1161 = vmatprep.subr.mxu0 0.0
    %1162 = vmatpush1.msra.mxu0 0.0
    %1163 = vmatprep.subr.mxu0 0.0
    %1164 = vmatpush1.msra.mxu0 0.0
    %1165 = vmatprep.subr.mxu0 0.0
    %1166 = vmatpush1.msra.mxu0 0.0
    %1167 = vmatprep.subr.mxu0 0.0
    %1168 = vmatpush1.msra.mxu0 0.0
    %1169 = vmatprep.subr.mxu0 0.0
    %1170 = vmatpush1.msra.mxu0 0.0
    %1171 = vmatprep.subr.mxu0 0.0
    %1172 = vmatpush1.msra.mxu0 0.0
    %1173 = vmatprep.subr.mxu0 0.0
    %1174 = vmatpush1.msra.mxu0 0.0
    %1175 = vmatprep.subr.mxu0 0.0
    %1176 = vmatpush1.msra.mxu0 0.0
    %1177 = vmatprep.subr.mxu0 0.0
    %1178 = vmatpush1.msra.mxu0 %v1142
    %1179 = vmatprep.subr.mxu0 0.0
    %1180 = vmatpush1.msra.mxu0 %v1141
    %1181 = vmatprep.subr.mxu0 0.0
    %1182 = vmatpush1.msra.mxu0 %v1140
    %1183 = vmatprep.subr.mxu0 0.0
    %1184 = vmatpush1.msra.mxu0 %v1139
    %1185 = vmatprep.subr.mxu0 0.0
    %1186 = vmatpush2.msra.mxu0 0.0
    %1187 = vmatprep.subr.mxu0 0.0
    %1188 = vmatpush2.msra.mxu0 0.0
    %1189 = vmatprep.subr.mxu0 0.0
    %1190 = vmatpush2.msra.mxu0 0.0
    %1191 = vmatprep.subr.mxu0 0.0
    %1192 = vmatpush2.msra.mxu0 0.0
    %1193 = vmatprep.subr.mxu0 0.0
    %1194 = vmatpush2.msra.mxu0 0.0
    %1195 = vmatprep.subr.mxu0 0.0
    %1196 = vmatpush2.msra.mxu0 0.0
    %1197 = vmatprep.subr.mxu0 0.0
    %1198 = vmatpush2.msra.mxu0 0.0
    %1199 = vmatprep.subr.mxu0 0.0
    %1200 = vmatpush2.msra.mxu0 0.0
    %1201 = vmatprep.subr.mxu0 0.0
    %1202 = vmatpush2.msra.mxu0 0.0
    %1203 = vmatprep.subr.mxu0 0.0
    %1204 = vmatpush2.msra.mxu0 0.0
    %1205 = vmatprep.subr.mxu0 0.0
    %1206 = vmatpush2.msra.mxu0 0.0
    %1207 = vmatprep.subr.mxu0 0.0
    %1208 = vmatpush2.msra.mxu0 0.0
    %1209 = vmatprep.subr.mxu0 0.0
    %1210 = vmatpush2.msra.mxu0 0.0
    %1211 = vmatprep.subr.mxu0 0.0
    %1212 = vmatpush2.msra.mxu0 0.0
    %1213 = vmatprep.subr.mxu0 0.0
    %1214 = vmatpush2.msra.mxu0 0.0
    %1215 = vmatprep.subr.mxu0 0.0
    %1216 = vmatpush2.msra.mxu0 0.0
    %1217 = vmatprep.mubr.f32.mxu0 0.0
    %1218 = vmatmul.mubr.f32.gmra.mxu0 %v1148
    %v1219 = vpop.f32.mrf.mxu0
    %v1220 = vadd.f32 %v1146, %v1219
    %v1221 = vpop.f32.mrf.mxu0
    %1222 = vmatprep.mubr.f32.mxu0 0.0
    %1223 = vmatmul.mubr.f32.gmra.mxu0 %v1151
    %v1224 = vpop.f32.mrf.mxu0
    %v1225 = vadd.f32 %v1146, %v1224
    %v1226 = vpop.f32.mrf.mxu0
    %1227 = vdwg.mxu0
    %v1228 = vmul.f32 %v1220, 0.5
    %v1229 = vmul.f32 %v1225, 0.5
    %v1230 = vmul.f32 %v1220, 0.70710677
    %v1231 = vmul.f32 %v1225, 0.70710677
    %vm1232 = vcmp.ge.f32.partialorder %v1230, 0.0
    %vm1233 = vcmp.ge.f32.partialorder %v1231, 0.0
    %v1234 = vsel %vm1232, 1.0, -1.0
    %v1235 = vsel %vm1233, 1.0, -1.0
    %v1236 = vand.u32 2147483647, %v1230
    %v1237 = vand.u32 2147483647, %v1231
    %v1238 = vmul.f32 %v1236, 0.3275911
    %v1239 = vmul.f32 %v1237, 0.3275911
    %v1240 = vadd.f32 %v1238, 1.0
    %v1241 = vadd.f32 %v1239, 1.0
    %v1242 = vrcp.pop %v1240
    %v1243 = vmul.f32 1.0, %v1242
    %v1244 = vrcp.pop %v1241
    %v1245 = vmul.f32 1.0, %v1244
    %v1246 = vmul.f32 %v1243, 1.0614054
    %v1247 = vmul.f32 %v1245, 1.0614054
    %v1248 = vadd.f32 %v1246, -1.4531521
    %v1249 = vadd.f32 %v1247, -1.4531521
    %v1250 = vmul.f32 %v1248, %v1243
    %v1251 = vmul.f32 %v1249, %v1245
    %v1252 = vadd.f32 %v1250, 1.4214138
    %v1253 = vadd.f32 %v1251, 1.4214138
    %v1254 = vmul.f32 %v1252, %v1243
    %v1255 = vmul.f32 %v1253, %v1245
    %v1256 = vadd.f32 %v1254, -0.28449672
    %v1257 = vadd.f32 %v1255, -0.28449672
    %v1258 = vmul.f32 %v1256, %v1243
    %v1259 = vmul.f32 %v1257, %v1245
    %v1260 = vadd.f32 %v1258, 0.2548296
    %v1261 = vadd.f32 %v1259, 0.2548296
    %v1262 = vmul.f32 %v1260, %v1243
    %v1263 = vmul.f32 %v1261, %v1245
    %v1264 = vsub.f32 0.0, %v1236
    %v1265 = vsub.f32 0.0, %v1237
    %v1266 = vmul.f32 %v1264, %v1236
    %v1267 = vmul.f32 %v1265, %v1237
    %v1268 = vmul.f32 %v1266, 1.442695
    %v1269 = vpow.pop %v1268
    %v1270 = vmul.f32 %v1267, 1.442695
    %v1271 = vpow.pop %v1270
    %v1272 = vmul.f32 %v1262, %v1269
    %v1273 = vmul.f32 %v1263, %v1271
    %v1274 = vsub.f32 1.0, %v1272
    %v1275 = vsub.f32 1.0, %v1273
    %v1276 = vmul.f32 %v1234, %v1274
    %v1277 = vmul.f32 %v1235, %v1275
    %v1278 = vadd.f32 %v1276, 1.0
    %v1279 = vadd.f32 %v1277, 1.0
    %v1280 = vmul.f32 %v1228, %v1278
    %v1281 = vmul.f32 %v1229, %v1279
    %v1282 = vld [vmem:[%s5] sm:$0xff]
    %v1283 = vld [vmem:[%s5 + $0x8] sm:$0xff]
    %v1284 = vld [vmem:[%s5 + $0x10] sm:$0xff]
    %v1285 = vld [vmem:[%s5 + $0x18] sm:$0xff]
    %v1286 = vld [vmem:[%s5 + $0x20] sm:$0xff]
    %v1287 = vld [vmem:[%s5 + $0x28] sm:$0xff]
    %v1288 = vld [vmem:[%s5 + $0x30] sm:$0xff]
    %v1289 = vld [vmem:[%s5 + $0x38] sm:$0xff]
    %v1290 = vlaneseq
    %v1291 = vshrl.u32 %v1290, 7
    %v1292 = vsub.s32 1, %v1291
    %v1293 = vrot.slane %v33, %v1292
    %vm1294 = vcmask 523264
    %v1296 = vsel %vm1294, %v1280, 0
    %v1299 = vsel %vm1294, %v1281, 0
    %1301 = vmatprep.subr.mxu0 0.0
    %1302 = vmatpush1.msra.mxu0 0.0
    %1303 = vmatprep.subr.mxu0 0.0
    %1304 = vmatpush1.msra.mxu0 0.0
    %1305 = vmatprep.subr.mxu0 0.0
    %1306 = vmatpush1.msra.mxu0 0.0
    %1307 = vmatprep.subr.mxu0 0.0
    %1308 = vmatpush1.msra.mxu0 0.0
    %1309 = vmatprep.subr.mxu0 0.0
    %1310 = vmatpush1.msra.mxu0 0.0
    %1311 = vmatprep.subr.mxu0 0.0
    %1312 = vmatpush1.msra.mxu0 0.0
    %1313 = vmatprep.subr.mxu0 0.0
    %1314 = vmatpush1.msra.mxu0 0.0
    %1315 = vmatprep.subr.mxu0 0.0
    %1316 = vmatpush1.msra.mxu0 0.0
    %1317 = vmatprep.subr.mxu0 0.0
    %1318 = vmatpush1.msra.mxu0 %v1289
    %1319 = vmatprep.subr.mxu0 0.0
    %1320 = vmatpush1.msra.mxu0 %v1288
    %1321 = vmatprep.subr.mxu0 0.0
    %1322 = vmatpush1.msra.mxu0 %v1287
    %1323 = vmatprep.subr.mxu0 0.0
    %1324 = vmatpush1.msra.mxu0 %v1286
    %1325 = vmatprep.subr.mxu0 0.0
    %1326 = vmatpush1.msra.mxu0 %v1285
    %1327 = vmatprep.subr.mxu0 0.0
    %1328 = vmatpush1.msra.mxu0 %v1284
    %1329 = vmatprep.subr.mxu0 0.0
    %1330 = vmatpush1.msra.mxu0 %v1283
    %1331 = vmatprep.subr.mxu0 0.0
    %1332 = vmatpush1.msra.mxu0 %v1282
    %1333 = vmatprep.subr.mxu0 0.0
    %1334 = vmatpush2.msra.mxu0 0.0
    %1335 = vmatprep.subr.mxu0 0.0
    %1336 = vmatpush2.msra.mxu0 0.0
    %1337 = vmatprep.subr.mxu0 0.0
    %1338 = vmatpush2.msra.mxu0 0.0
    %1339 = vmatprep.subr.mxu0 0.0
    %1340 = vmatpush2.msra.mxu0 0.0
    %1341 = vmatprep.subr.mxu0 0.0
    %1342 = vmatpush2.msra.mxu0 0.0
    %1343 = vmatprep.subr.mxu0 0.0
    %1344 = vmatpush2.msra.mxu0 0.0
    %1345 = vmatprep.subr.mxu0 0.0
    %1346 = vmatpush2.msra.mxu0 0.0
    %1347 = vmatprep.subr.mxu0 0.0
    %1348 = vmatpush2.msra.mxu0 0.0
    %1349 = vmatprep.subr.mxu0 0.0
    %1350 = vmatpush2.msra.mxu0 0.0
    %1351 = vmatprep.subr.mxu0 0.0
    %1352 = vmatpush2.msra.mxu0 0.0
    %1353 = vmatprep.subr.mxu0 0.0
    %1354 = vmatpush2.msra.mxu0 0.0
    %1355 = vmatprep.subr.mxu0 0.0
    %1356 = vmatpush2.msra.mxu0 0.0
    %1357 = vmatprep.subr.mxu0 0.0
    %1358 = vmatpush2.msra.mxu0 0.0
    %1359 = vmatprep.subr.mxu0 0.0
    %1360 = vmatpush2.msra.mxu0 0.0
    %1361 = vmatprep.subr.mxu0 0.0
    %1362 = vmatpush2.msra.mxu0 0.0
    %1363 = vmatprep.subr.mxu0 0.0
    %1364 = vmatpush2.msra.mxu0 0.0
    %1365 = vmatprep.mubr.f32.mxu0 0.0
    %1366 = vmatmul.mubr.f32.gmra.mxu0 %v1296
    %v1367 = vpop.f32.mrf.mxu0
    %v1368 = vadd.f32 %v1293, %v1367
    %v1369 = vpop.f32.mrf.mxu0
    %1370 = vmatprep.mubr.f32.mxu0 0.0
    %1371 = vmatmul.mubr.f32.gmra.mxu0 %v1299
    %v1372 = vpop.f32.mrf.mxu0
    %v1373 = vadd.f32 %v1293, %v1372
    %v1374 = vpop.f32.mrf.mxu0
    %1375 = vdwg.mxu0
    %v1376 = vadd.f32 %v1368, %v1137
    %v1377 = vadd.f32 %v1373, %v1138
    %v1378 = vsel %vm39, %v1376, 0.0
    %1379 = vadd.xlane.f32.xlu0 %v1378
    %v1380 = vpop.xlane.xlu0 %1379
    %v1381 = vsel %vm39, %v1377, 0.0
    %1382 = vadd.xlane.f32.xlu0 %v1381
    %v1383 = vpop.xlane.xlu0 %1382
    %v1384 = vmul.f32 %v1380, %v1106
    %v1385 = vmul.f32 %v1383, %v1106
    %v1386 = vsub.f32 %v1376, %v1384
    %v1387 = vsub.f32 %v1377, %v1385
    %v1388 = vmul.f32 %v1386, %v1386
    %v1389 = vmul.f32 %v1387, %v1387
    %v1390 = vsel %vm39, %v1388, 0.0
    %1391 = vadd.xlane.f32.xlu0 %v1390
    %v1392 = vpop.xlane.xlu0 %1391
    %v1393 = vsel %vm39, %v1389, 0.0
    %1394 = vadd.xlane.f32.xlu0 %v1393
    %v1395 = vpop.xlane.xlu0 %1394
    %v1396 = vmul.f32 %v1392, %v1106
    %v1397 = vmul.f32 %v1395, %v1106
    %v1398 = vadd.f32 %v1396, 1e-05
    %v1399 = vadd.f32 %v1397, 1e-05
    %v1400 = vrsqrt.pop %v1398
    %v1401 = vrsqrt.pop %v1399
    %v1402 = vmul.f32 %v1386, %v1400
    %v1403 = vmul.f32 %v1387, %v1401
    %v1404 = vlaneseq
    %v1405 = vshrl.u32 %v1404, 7
    %v1406 = vsub.s32 4, %v1405
    %v1407 = vrot.slane %v33, %v1406
    %v1408 = vmul.f32 %v1402, %v1407
    %v1409 = vmul.f32 %v1403, %v1407
    %v1410 = vlaneseq
    %v1411 = vshrl.u32 %v1410, 7
    %v1412 = vsub.s32 5, %v1411
    %v1413 = vrot.slane %v33, %v1412
    %v1414 = vadd.f32 %v1408, %v1413
    %v1415 = vadd.f32 %v1409, %v1413
    %v1416 = vmul.f32 %v1414, %v1089
    %v1417 = vmul.f32 %v1415, %v1094
    %1418 = vst.msk [vmem:[#allocation2] sm:$0xff] %vm39, %v1416
    %1419 = vst.msk [vmem:[#allocation2 + $0x8] sm:$0xff] %vm39, %v1417
    // Predicated region
    $region30: #{tpu_custom_call.1} parent=1 // pred_check
      _
    $region31: #{tpu_custom_call.1} parent=1 // pred_check_branch
      %1421 = sbr.rel (0) target = $region33
    $region32: #{tpu_custom_call.1} parent=1 // pred_region
      %s1423 = ssub.s32 256, 256
      %1424 = vsyncadd [#allocation3], %s1423
      %s1425 = sshll.u32 [#allocation2], 4
      %s1426 = int_to_ptr.vmem [resolvable:$true] %s1425
      %1431 = dma.vmem_to_hbm [thread:$0]  %s1426, 256, %s7, [#allocation3], 128, 128, 8
    $region33: #{tpu_custom_call.1} parent=1 // pred_fallthru
      _
    // Predicated region
    $region34: #{tpu_custom_call.1} parent=1 // pred_check
      _
    $region35: #{tpu_custom_call.1} parent=1 // pred_check_branch
      %1433 = sbr.rel (0) target = $region37
    $region36: #{tpu_custom_call.1} parent=1 // pred_region
      %1434 = dma.done [#allocation3], 256
    $region37: #{tpu_custom_call.1} parent=1 // pred_fallthru
      _
    %1435 = vsyncpa [#allocation3], 1

</llo_original>
